<compile_context>
chip_gen: v7x
topology: tpu7x:2x2x1
jax: 0.10.0
libtpu: 0.0.40
codegen_flags: <defaults>
</compile_context>

<pallas_src>
import jax
import jax.numpy as jnp
from jax import lax
from jax.experimental import pallas as pl
from jax.experimental.pallas import tpu as pltpu

_MIB = 1024 * 1024


def _ceil_to(a, b):
    return -(-a // b) * b


def _vmem_capacity_bytes():
    """Physical per-core VMEM; conservative 64 MiB (v7x) if the query fails."""
    try:
        info = pltpu.get_tpu_info()
        cap = int(getattr(info, "vmem_capacity_bytes", 0) or 0)
        if cap > 0:
            return cap
    except Exception:
        pass
    return 64 * _MIB


def _pick_tile(N, vmem_cap, requested=None):
    """Query-axis row-tile width.  On small-VMEM chips (v7x) prefer TN=256 at
    large N; on v5e/v6e (128 MiB physical) keep TN=512."""
    if requested is not None:
        if N % requested != 0:
            raise ValueError(f"tile_n={requested} must divide N={N}")
        return requested
    small_vmem = vmem_cap < 96 * _MIB
    prefs = (256, 512, 128) if (small_vmem and N >= 2048) else (512, 256, 128)
    for t in prefs:
        if t <= N and N % t == 0:
            return t
    return N


def _vmem_bytes(C, N, TN, IC, cache_scores):
    """Rough per-grid-step VMEM footprint (padded to TPU tiles, +20% headroom)."""
    f32, bf16, lane = 4, 2, 128
    NT = N // TN
    cp = max(_ceil_to(C, 8), 8)
    icp = max(_ceil_to(IC, 16), 16)                     # bf16 sublane packing
    io = 2 * 2 * cp * max(N, lane) * f32                # x in + z out, double-buffered
    wts = 2 * (_ceil_to(3 * IC, 8) * (max(C, lane) + lane)
               + cp * (max(IC, lane) + lane)) * f32     # packed weights + biases
    resid = 3 * icp * N * bf16 + 2 * 8 * N * f32        # g/theta/phi + (1, N) stats
    trans = 2 * TN * N * f32 + 3 * icp * TN * f32 + (icp + cp) * TN * f32
    total = io + wts + resid + trans
    if cache_scores:
        total += NT * TN * N * bf16 + NT * 8 * N * f32  # exp cache + max snapshots
    return int(total * 1.2)


def _vmem_limit_bytes(vmem_cap, est):
    """Scoped-VMEM request: >= 32 MiB, never above ~13/16 of physical VMEM
    (leaves compiler internal-scratch headroom: ~52 MiB on v7x, ~104 on v5e/v6e)."""
    ceiling = (vmem_cap * 13) // 16
    return max(min(max(est, 32 * _MIB), ceiling), 16 * _MIB)


def _make_kernel(C, N, IC, TN, cache_scores, bf16_exp):
    NT = N // TN
    unroll = NT <= 4
    dn_scores = (((0,), (0,)), ((), ()))   # contract channel dim of theta / phi
    dn_y = (((1,), (1,)), ((), ()))        # contract key (lane) dim of g / p

    def kernel(x_ref, w3_ref, b3_ref, ww_ref, bw_ref, z_ref, *scratch):
        if cache_scores:
            g_ref, th_ref, ph_ref, m_ref, s_ref, p_ref, msnap_ref = scratch
        else:
            g_ref, th_ref, ph_ref, m_ref, s_ref = scratch

        # ---- fused g/theta/phi projection, streamed over N -------------------
        # Only a (3*IC, TN) f32 transient is live; bf16 MXU operands, f32 acc;
        # g/theta/phi stay channels-major (IC, N) -> no transposes.
        def proj_body(t, carry):
            off = pl.multiple_of(t * TN, TN)
            x_t = x_ref[0, :, pl.ds(off, TN)].astype(jnp.bfloat16)            # (C, TN)
            proj = jnp.dot(w3_ref[...].astype(jnp.bfloat16), x_t,
                           preferred_element_type=jnp.float32) + b3_ref[...]  # (3IC, TN)
            g_ref[:, pl.ds(off, TN)] = proj[0 * IC:1 * IC, :].astype(jnp.bfloat16)
            th_ref[:, pl.ds(off, TN)] = proj[1 * IC:2 * IC, :].astype(jnp.bfloat16)
            ph_ref[:, pl.ds(off, TN)] = proj[2 * IC:3 * IC, :].astype(jnp.bfloat16)
            return carry

        lax.fori_loop(0, NT, proj_body, 0, unroll=unroll)

        # ---- pass 1: online per-key column-softmax stats (torch dim=1) -------
        # Score tile is (TN, N): query i on sublanes, key j on lanes, so the
        # stats are (1, N) and all broadcasts are cheap sublane broadcasts.
        m_ref[...] = jnp.full(m_ref.shape, -jnp.inf, dtype=m_ref.dtype)
        s_ref[...] = jnp.zeros(s_ref.shape, dtype=s_ref.dtype)

        def stats_body(t, carry):
            off = pl.multiple_of(t * TN, TN)
            th_t = th_ref[:, pl.ds(off, TN)]                                   # (IC, TN)
            f_t = lax.dot_general(th_t, ph_ref[...], dn_scores,
                                  preferred_element_type=jnp.float32)          # (TN, N)
            m_old = m_ref[...]
            m_new = jnp.maximum(m_old, jnp.max(f_t, axis=0, keepdims=True))    # (1, N)
            shifted = f_t - m_new
            if bf16_exp:
                shifted = shifted.astype(jnp.bfloat16)       # v6e/v7x bf16 EUP path
            p_t = jnp.exp(shifted)
            s_ref[...] = (s_ref[...] * jnp.exp(m_old - m_new)
                          + jnp.sum(p_t.astype(jnp.float32), axis=0, keepdims=True))
            m_ref[...] = m_new
            if cache_scores:
                p_ref[t] = p_t.astype(jnp.bfloat16)          # cache exp(f - m_running)
                msnap_ref[t] = m_new                         # running-max snapshot
            return carry

        lax.fori_loop(0, NT, stats_body, 0, unroll=unroll)

        # ---- fold the softmax reciprocal into g once (per-key column scale) --
        inv_s = pl.reciprocal(s_ref[...], approx=True)                         # (1, N)
        g_ref[...] = (g_ref[...].astype(jnp.float32) * inv_s).astype(jnp.bfloat16)

        # ---- pass 2: probabilities -> y -> W projection -> residual ----------
        def out_body(t, carry):
            off = pl.multiple_of(t * TN, TN)
            if cache_scores:
                # No score recompute, no per-element exp: rescale the cached
                # exp values from their running max to the final max.
                rescale = jnp.exp(msnap_ref[t] - m_ref[...])                   # (1, N)
                p_t = p_ref[t] * rescale.astype(jnp.bfloat16)                  # (TN, N)
            else:
                th_t = th_ref[:, pl.ds(off, TN)]
                f_t = lax.dot_general(th_t, ph_ref[...], dn_scores,
                                      preferred_element_type=jnp.float32)
                shifted = f_t - m_ref[...]
                if bf16_exp:
                    shifted = shifted.astype(jnp.bfloat16)
                p_t = jnp.exp(shifted).astype(jnp.bfloat16)                    # (TN, N)
            y_t = lax.dot_general(g_ref[...], p_t, dn_y,
                                  preferred_element_type=jnp.float32)          # (IC, TN)
            w_y = jnp.dot(ww_ref[...].astype(jnp.bfloat16),
                          y_t.astype(jnp.bfloat16),
                          preferred_element_type=jnp.float32) + bw_ref[...]    # (C, TN)
            x_t = x_ref[0, :, pl.ds(off, TN)]                                  # (C, TN)
            z_ref[0, :, pl.ds(off, TN)] = (w_y + x_t).astype(z_ref.dtype)      # lane-dense
            return carry

        lax.fori_loop(0, NT, out_body, 0, unroll=unroll)

    return kernel


def _pack_params(params):
    """Pack per-projection matmul params into the kernel's channels-major form."""
    w3 = jnp.concatenate(
        [params["wg"].T, params["wt"].T, params["wp"].T], axis=0)             # (3*IC, C)
    b3 = jnp.concatenate(
        [params["bg"], params["bt"], params["bp"]], axis=1).reshape(-1, 1)    # (3*IC, 1)
    ww = params["ww"].T                                                       # (C, IC)
    bw = params["bw"].reshape(-1, 1)                                          # (C, 1)
    return w3, b3, ww, bw


def nonlocal_block_2d(x, params, tile_n=None, cache_scores=None, bf16_exp=False):
    """x: (B, C, H, W) float32 (NCHW, like PyTorch). Returns z with same shape."""
    B, C, H, W = x.shape
    N = H * W
    IC = params["wg"].shape[1]

    vmem_cap = _vmem_capacity_bytes()
    TN = _pick_tile(N, vmem_cap, tile_n)
    NT = N // TN

    if cache_scores is None:
        # Cache the (N, N) bf16 exp(f) matrix when it (plus residents) fits,
        # removing the pass-2 score matmul + exps; otherwise stream (recompute).
        cache_scores = _vmem_bytes(C, N, TN, IC, True) <= (vmem_cap * 11) // 16

    w3, b3, ww, bw = _pack_params(params)
    x_cn = x.reshape(B, C, N)        # channels-major, free reshape (no HBM transpose)

    scratch = [
        pltpu.VMEM((IC, N), jnp.bfloat16),   # g   (later scaled by 1/sum)
        pltpu.VMEM((IC, N), jnp.bfloat16),   # theta
        pltpu.VMEM((IC, N), jnp.bfloat16),   # phi
        pltpu.VMEM((1, N), jnp.float32),     # running per-key column max
        pltpu.VMEM((1, N), jnp.float32),     # running per-key exp-sum
    ]
    if cache_scores:
        scratch += [
            pltpu.VMEM((NT, TN, N), jnp.bfloat16),   # exp(f - m_running) cache
            pltpu.VMEM((NT, 1, N), jnp.float32),     # per-tile running-max snapshot
        ]

    kernel = _make_kernel(C=C, N=N, IC=IC, TN=TN,
                          cache_scores=cache_scores, bf16_exp=bf16_exp)

    # TODO(synk): v7x-only — when B < 2, split the row-tile loops across the two
    # TensorCores (pl.core_map + VMEM_SHARED/CMEM combine of the (1, N) stats).
    z_cn = pl.pallas_call(
        kernel,
        out_shape=jax.ShapeDtypeStruct((B, C, N), x.dtype),
        grid_spec=pltpu.PrefetchScalarGridSpec(
            num_scalar_prefetch=0,
            grid=(B,),
            in_specs=[
                pl.BlockSpec((1, C, N), lambda b: (b, 0, 0)),   # x (single view)
                pl.BlockSpec((3 * IC, C), lambda b: (0, 0)),    # packed Wg|Wt|Wp
                pl.BlockSpec((3 * IC, 1), lambda b: (0, 0)),    # packed biases
                pl.BlockSpec((C, IC), lambda b: (0, 0)),        # Ww (channels-major)
                pl.BlockSpec((C, 1), lambda b: (0, 0)),         # bw
            ],
            out_specs=pl.BlockSpec((1, C, N), lambda b: (b, 0, 0)),
            scratch_shapes=scratch,
        ),
        compiler_params=pltpu.CompilerParams(
            dimension_semantics=("parallel",),
            vmem_limit_bytes=_vmem_limit_bytes(
                vmem_cap, _vmem_bytes(C, N, TN, IC, cache_scores)),
        ),
    )(x_cn, w3, b3, ww, bw)

    return z_cn.reshape(B, C, H, W)


def init_params(key, in_channels, inter_channels, zero_w_init=True):
    """Parameters in (in, out) matmul form (Conv2d 1x1 weights stored transposed).
    zero_w_init=True mirrors nn.init.constant(self.W.weight/bias, 0)."""
    ks = jax.random.split(key, 8)
    b_in = 1.0 / (in_channels ** 0.5)
    b_ic = 1.0 / (inter_channels ** 0.5)
    u = lambda k, shape, b: jax.random.uniform(k, shape, jnp.float32, -b, b)
    params = {
        "wg": u(ks[0], (in_channels, inter_channels), b_in),
        "bg": u(ks[1], (1, inter_channels), b_in),
        "wt": u(ks[2], (in_channels, inter_channels), b_in),
        "bt": u(ks[3], (1, inter_channels), b_in),
        "wp": u(ks[4], (in_channels, inter_channels), b_in),
        "bp": u(ks[5], (1, inter_channels), b_in),
    }
    if zero_w_init:
        params["ww"] = jnp.zeros((inter_channels, in_channels), jnp.float32)
        params["bw"] = jnp.zeros((1, in_channels), jnp.float32)
    else:
        params["ww"] = u(ks[6], (inter_channels, in_channels), b_ic)
        params["bw"] = u(ks[7], (1, in_channels), b_ic)
    return params


def nonlocal_block_2d_ref(x, params):
    """Pure-JAX reference mirroring the PyTorch forward, with the same bf16
    MXU-operand rounding policy as the kernel (f32 accumulation everywhere) so
    the comparison isolates the structural correctness of the tiled kernel."""
    B, C, H, W = x.shape
    N = H * W
    bf = jnp.bfloat16
    xf = jnp.transpose(x.reshape(B, C, N), (0, 2, 1))                        # (B, N, C)
    xb = xf.astype(bf)

    def proj(w, b):
        return (jnp.einsum("bnc,ci->bni", xb, w.astype(bf),
                           preferred_element_type=jnp.float32) + b).astype(bf)

    g_x = proj(params["wg"], params["bg"])
    th_x = proj(params["wt"], params["bt"])
    ph_x = proj(params["wp"], params["bp"])
    f = jnp.einsum("bni,bmi->bnm", th_x, ph_x,
                   preferred_element_type=jnp.float32)                       # (B, N, N)
    f_div = jax.nn.softmax(f, axis=1)                                        # torch dim=1
    y = jnp.einsum("bnm,bmi->bni", f_div.astype(bf), g_x,
                   preferred_element_type=jnp.float32)                       # (B, N, IC)
    w_y = jnp.einsum("bni,ic->bnc", y.astype(bf), params["ww"].astype(bf),
                     preferred_element_type=jnp.float32) + params["bw"]
    z = w_y + xf
    return jnp.transpose(z, (0, 2, 1)).reshape(B, C, H, W).astype(x.dtype)


if __name__ == "__main__":
    B, C, H, W = 2, 4, 16, 16
    IC = 2

    key = jax.random.PRNGKey(0)
    kx, kp = jax.random.split(key)
    x = jax.random.normal(kx, (B, C, H, W), jnp.float32)
    # The module initializes W to zero (z == x exactly); use nonzero W here so
    # the self-test actually exercises the attention path.
    params = init_params(kp, C, IC, zero_w_init=False)

    z_ref = nonlocal_block_2d_ref(x, params)

    # tile_n=128 -> 2 row tiles at N=256, exercising both the cached-score path
    # and the streamed two-pass (large-N) fallback.
    z_cached = jax.block_until_ready(
        nonlocal_block_2d(x, params, tile_n=128, cache_scores=True))
    z_stream = jax.block_until_ready(
        nonlocal_block_2d(x, params, tile_n=128, cache_scores=False))

    for name, z in (("cached", z_cached), ("streamed", z_stream)):
        assert z.shape == (B, C, H, W)
        max_err = float(jnp.max(jnp.abs(z - z_ref)))
        assert jnp.allclose(z, z_ref, atol=3e-2, rtol=3e-2), (
            f"{name} path mismatch vs reference (max abs err={max_err})")

    print("KERNEL_OK")
</pallas_src>

<mosaic_0001>
module attributes {stable_mosaic.version = 11 : i64} {
  func.func @kernel(%arg0: i32, %arg1: memref<1x4x256xf32, #tpu.memory_space<vmem>>, %arg2: memref<6x4xf32, #tpu.memory_space<vmem>>, %arg3: memref<6x1xf32, #tpu.memory_space<vmem>>, %arg4: memref<4x2xf32, #tpu.memory_space<vmem>>, %arg5: memref<4x1xf32, #tpu.memory_space<vmem>>, %arg6: memref<1x4x256xf32, #tpu.memory_space<vmem>>, %arg7: memref<2x256xbf16, #tpu.memory_space<vmem>>, %arg8: memref<2x256xbf16, #tpu.memory_space<vmem>>, %arg9: memref<2x256xbf16, #tpu.memory_space<vmem>>, %arg10: memref<1x256xf32, #tpu.memory_space<vmem>>, %arg11: memref<1x256xf32, #tpu.memory_space<vmem>>, %arg12: memref<2x128x256xbf16, #tpu.memory_space<vmem>>, %arg13: memref<2x1x256xf32, #tpu.memory_space<vmem>>) attributes {dimension_semantics = [#tpu.dimension_semantics<parallel>], iteration_bounds = array<i64: 2>, scalar_prefetch = 0 : i64, scratch_operands = 7 : i64, tpu.core_type = #tpu.core_type<tc>, window_params = [{transform_indices = @transform_0, window_bounds = array<i64: 1, 4, 256>}, {pipeline_mode = #tpu.pipeline_mode<synchronous>, transform_indices = @transform_1, window_bounds = array<i64: 6, 4>}, {pipeline_mode = #tpu.pipeline_mode<synchronous>, transform_indices = @transform_2, window_bounds = array<i64: 6, 1>}, {pipeline_mode = #tpu.pipeline_mode<synchronous>, transform_indices = @transform_3, window_bounds = array<i64: 4, 2>}, {pipeline_mode = #tpu.pipeline_mode<synchronous>, transform_indices = @transform_4, window_bounds = array<i64: 4, 1>}, {transform_indices = @transform_5, window_bounds = array<i64: 1, 4, 256>}]} {
    %c0_i32 = arith.constant 0 : i32
    %c128_i32 = arith.constant 128 : i32
    %0 = arith.muli %c0_i32, %c128_i32 : i32
    %1 = tpu.assume_multiple %0, 128 : i32
    %c0 = arith.constant 0 : index
    %c0_0 = arith.constant 0 : index
    %2 = arith.index_cast %1 : i32 to index
    %3 = vector.load %arg1[%c0, %c0_0, %2] : memref<1x4x256xf32, #tpu.memory_space<vmem>>, vector<1x4x128xf32>
    %4 = vector.shape_cast %3 : vector<1x4x128xf32> to vector<4x128xf32>
    %5 = arith.truncf %4 : vector<4x128xf32> to vector<4x128xbf16>
    %c0_1 = arith.constant 0 : index
    %c0_2 = arith.constant 0 : index
    %6 = vector.load %arg2[%c0_1, %c0_2] : memref<6x4xf32, #tpu.memory_space<vmem>>, vector<6x4xf32>
    %7 = arith.truncf %6 : vector<6x4xf32> to vector<6x4xbf16>
    %cst = arith.constant dense<0.000000e+00> : vector<6x128xf32>
    %8 = tpu.matmul %7, %5, %cst {dimension_numbers = #tpu.dot_dimension_numbers<[1], [0], [0], [1], [0, 0, 1, 1], [], []>} : vector<6x4xbf16>, vector<4x128xbf16>, vector<6x128xf32> -> vector<6x128xf32>
    %c0_3 = arith.constant 0 : index
    %c0_4 = arith.constant 0 : index
    %9 = vector.load %arg3[%c0_3, %c0_4] : memref<6x1xf32, #tpu.memory_space<vmem>>, vector<6x1xf32>
    %10 = vector.broadcast %9 : vector<6x1xf32> to vector<6x128xf32>
    %11 = arith.addf %8, %10 : vector<6x128xf32>
    %12 = vector.extract_strided_slice %11 {offsets = [0, 0], sizes = [2, 128], strides = [1, 1]} : vector<6x128xf32> to vector<2x128xf32>
    %13 = arith.truncf %12 : vector<2x128xf32> to vector<2x128xbf16>
    %c0_5 = arith.constant 0 : index
    %14 = arith.index_cast %1 : i32 to index
    %15 = vector.load %arg7[%c0_5, %14] : memref<2x256xbf16, #tpu.memory_space<vmem>>, vector<2x128xbf16>
    tpu.vector_store %arg7[%c0_5, %14], %13 {strides = array<i32>} : memref<2x256xbf16, #tpu.memory_space<vmem>>, vector<2x128xbf16>,
    %16 = vector.extract_strided_slice %11 {offsets = [2, 0], sizes = [2, 128], strides = [1, 1]} : vector<6x128xf32> to vector<2x128xf32>
    %17 = arith.truncf %16 : vector<2x128xf32> to vector<2x128xbf16>
    %c0_6 = arith.constant 0 : index
    %18 = arith.index_cast %1 : i32 to index
    %19 = vector.load %arg8[%c0_6, %18] : memref<2x256xbf16, #tpu.memory_space<vmem>>, vector<2x128xbf16>
    tpu.vector_store %arg8[%c0_6, %18], %17 {strides = array<i32>} : memref<2x256xbf16, #tpu.memory_space<vmem>>, vector<2x128xbf16>,
    %20 = vector.extract_strided_slice %11 {offsets = [4, 0], sizes = [2, 128], strides = [1, 1]} : vector<6x128xf32> to vector<2x128xf32>
    %21 = arith.truncf %20 : vector<2x128xf32> to vector<2x128xbf16>
    %c0_7 = arith.constant 0 : index
    %22 = arith.index_cast %1 : i32 to index
    %23 = vector.load %arg9[%c0_7, %22] : memref<2x256xbf16, #tpu.memory_space<vmem>>, vector<2x128xbf16>
    tpu.vector_store %arg9[%c0_7, %22], %21 {strides = array<i32>} : memref<2x256xbf16, #tpu.memory_space<vmem>>, vector<2x128xbf16>,
    %c1_i32 = arith.constant 1 : i32
    %c128_i32_8 = arith.constant 128 : i32
    %24 = arith.muli %c1_i32, %c128_i32_8 : i32
    %25 = tpu.assume_multiple %24, 128 : i32
    %c0_9 = arith.constant 0 : index
    %c0_10 = arith.constant 0 : index
    %26 = arith.index_cast %25 : i32 to index
    %27 = vector.load %arg1[%c0_9, %c0_10, %26] : memref<1x4x256xf32, #tpu.memory_space<vmem>>, vector<1x4x128xf32>
    %28 = vector.shape_cast %27 : vector<1x4x128xf32> to vector<4x128xf32>
    %29 = arith.truncf %28 : vector<4x128xf32> to vector<4x128xbf16>
    %c0_11 = arith.constant 0 : index
    %c0_12 = arith.constant 0 : index
    %30 = vector.load %arg2[%c0_11, %c0_12] : memref<6x4xf32, #tpu.memory_space<vmem>>, vector<6x4xf32>
    %31 = arith.truncf %30 : vector<6x4xf32> to vector<6x4xbf16>
    %cst_13 = arith.constant dense<0.000000e+00> : vector<6x128xf32>
    %32 = tpu.matmul %31, %29, %cst_13 {dimension_numbers = #tpu.dot_dimension_numbers<[1], [0], [0], [1], [0, 0, 1, 1], [], []>} : vector<6x4xbf16>, vector<4x128xbf16>, vector<6x128xf32> -> vector<6x128xf32>
    %c0_14 = arith.constant 0 : index
    %c0_15 = arith.constant 0 : index
    %33 = vector.load %arg3[%c0_14, %c0_15] : memref<6x1xf32, #tpu.memory_space<vmem>>, vector<6x1xf32>
    %34 = vector.broadcast %33 : vector<6x1xf32> to vector<6x128xf32>
    %35 = arith.addf %32, %34 : vector<6x128xf32>
    %36 = vector.extract_strided_slice %35 {offsets = [0, 0], sizes = [2, 128], strides = [1, 1]} : vector<6x128xf32> to vector<2x128xf32>
    %37 = arith.truncf %36 : vector<2x128xf32> to vector<2x128xbf16>
    %c0_16 = arith.constant 0 : index
    %38 = arith.index_cast %25 : i32 to index
    %39 = vector.load %arg7[%c0_16, %38] : memref<2x256xbf16, #tpu.memory_space<vmem>>, vector<2x128xbf16>
    tpu.vector_store %arg7[%c0_16, %38], %37 {strides = array<i32>} : memref<2x256xbf16, #tpu.memory_space<vmem>>, vector<2x128xbf16>,
    %40 = vector.extract_strided_slice %35 {offsets = [2, 0], sizes = [2, 128], strides = [1, 1]} : vector<6x128xf32> to vector<2x128xf32>
    %41 = arith.truncf %40 : vector<2x128xf32> to vector<2x128xbf16>
    %c0_17 = arith.constant 0 : index
    %42 = arith.index_cast %25 : i32 to index
    %43 = vector.load %arg8[%c0_17, %42] : memref<2x256xbf16, #tpu.memory_space<vmem>>, vector<2x128xbf16>
    tpu.vector_store %arg8[%c0_17, %42], %41 {strides = array<i32>} : memref<2x256xbf16, #tpu.memory_space<vmem>>, vector<2x128xbf16>,
    %44 = vector.extract_strided_slice %35 {offsets = [4, 0], sizes = [2, 128], strides = [1, 1]} : vector<6x128xf32> to vector<2x128xf32>
    %45 = arith.truncf %44 : vector<2x128xf32> to vector<2x128xbf16>
    %c0_18 = arith.constant 0 : index
    %46 = arith.index_cast %25 : i32 to index
    %47 = vector.load %arg9[%c0_18, %46] : memref<2x256xbf16, #tpu.memory_space<vmem>>, vector<2x128xbf16>
    tpu.vector_store %arg9[%c0_18, %46], %45 {strides = array<i32>} : memref<2x256xbf16, #tpu.memory_space<vmem>>, vector<2x128xbf16>,
    %c2_i32 = arith.constant 2 : i32
    %cst_19 = arith.constant 0xFF800000 : f32
    %48 = vector.broadcast %cst_19 : f32 to vector<1x256xf32>
    %c0_20 = arith.constant 0 : index
    %c0_21 = arith.constant 0 : index
    %49 = vector.load %arg10[%c0_20, %c0_21] : memref<1x256xf32, #tpu.memory_space<vmem>>, vector<1x256xf32>
    tpu.vector_store %arg10[%c0_20, %c0_21], %48 {strides = array<i32>} : memref<1x256xf32, #tpu.memory_space<vmem>>, vector<1x256xf32>,
    %cst_22 = arith.constant 0.000000e+00 : f32
    %50 = vector.broadcast %cst_22 : f32 to vector<1x256xf32>
    %c0_23 = arith.constant 0 : index
    %c0_24 = arith.constant 0 : index
    %51 = vector.load %arg11[%c0_23, %c0_24] : memref<1x256xf32, #tpu.memory_space<vmem>>, vector<1x256xf32>
    tpu.vector_store %arg11[%c0_23, %c0_24], %50 {strides = array<i32>} : memref<1x256xf32, #tpu.memory_space<vmem>>, vector<1x256xf32>,
    %c0_i32_25 = arith.constant 0 : i32
    %c128_i32_26 = arith.constant 128 : i32
    %52 = arith.muli %c0_i32_25, %c128_i32_26 : i32
    %53 = tpu.assume_multiple %52, 128 : i32
    %c0_27 = arith.constant 0 : index
    %54 = arith.index_cast %53 : i32 to index
    %55 = vector.load %arg8[%c0_27, %54] : memref<2x256xbf16, #tpu.memory_space<vmem>>, vector<2x128xbf16>
    %c0_28 = arith.constant 0 : index
    %c0_29 = arith.constant 0 : index
    %56 = vector.load %arg9[%c0_28, %c0_29] : memref<2x256xbf16, #tpu.memory_space<vmem>>, vector<2x256xbf16>
    %cst_30 = arith.constant dense<0.000000e+00> : vector<128x256xf32>
    %57 = tpu.matmul %55, %56, %cst_30 {dimension_numbers = #tpu.dot_dimension_numbers<[0], [0], [1], [1], [0, 1, 1, 1], [], []>} : vector<2x128xbf16>, vector<2x256xbf16>, vector<128x256xf32> -> vector<128x256xf32>
    %c0_31 = arith.constant 0 : index
    %c0_32 = arith.constant 0 : index
    %58 = vector.load %arg10[%c0_31, %c0_32] : memref<1x256xf32, #tpu.memory_space<vmem>>, vector<1x256xf32>
    %cst_33 = arith.constant dense<0xFF800000> : vector<256xf32>
    %59 = vector.multi_reduction <maximumf>, %57, %cst_33 [0] : vector<128x256xf32> to vector<256xf32>
    %60 = vector.shape_cast %59 : vector<256xf32> to vector<1x256xf32>
    %61 = arith.maximumf %58, %60 : vector<1x256xf32>
    %62 = vector.broadcast %61 : vector<1x256xf32> to vector<128x256xf32>
    %63 = arith.subf %57, %62 : vector<128x256xf32>
    %64 = math.exp %63 : vector<128x256xf32>
    %c0_34 = arith.constant 0 : index
    %c0_35 = arith.constant 0 : index
    %65 = vector.load %arg11[%c0_34, %c0_35] : memref<1x256xf32, #tpu.memory_space<vmem>>, vector<1x256xf32>
    %66 = arith.subf %58, %61 : vector<1x256xf32>
    %67 = math.exp %66 : vector<1x256xf32>
    %68 = arith.mulf %65, %67 : vector<1x256xf32>
    %cst_36 = arith.constant dense<0.000000e+00> : vector<256xf32>
    %69 = vector.multi_reduction <add>, %64, %cst_36 [0] : vector<128x256xf32> to vector<256xf32>
    %70 = vector.shape_cast %69 : vector<256xf32> to vector<1x256xf32>
    %71 = arith.addf %68, %70 : vector<1x256xf32>
    %c0_37 = arith.constant 0 : index
    %c0_38 = arith.constant 0 : index
    %72 = vector.load %arg11[%c0_37, %c0_38] : memref<1x256xf32, #tpu.memory_space<vmem>>, vector<1x256xf32>
    tpu.vector_store %arg11[%c0_37, %c0_38], %71 {strides = array<i32>} : memref<1x256xf32, #tpu.memory_space<vmem>>, vector<1x256xf32>,
    %c0_39 = arith.constant 0 : index
    %c0_40 = arith.constant 0 : index
    %73 = vector.load %arg10[%c0_39, %c0_40] : memref<1x256xf32, #tpu.memory_space<vmem>>, vector<1x256xf32>
    tpu.vector_store %arg10[%c0_39, %c0_40], %61 {strides = array<i32>} : memref<1x256xf32, #tpu.memory_space<vmem>>, vector<1x256xf32>,
    %74 = arith.truncf %64 : vector<128x256xf32> to vector<128x256xbf16>
    %75 = arith.index_cast %c0_i32_25 : i32 to index
    %c0_41 = arith.constant 0 : index
    %c0_42 = arith.constant 0 : index
    %76 = vector.load %arg12[%75, %c0_41, %c0_42] : memref<2x128x256xbf16, #tpu.memory_space<vmem>>, vector<1x128x256xbf16>
    %77 = vector.shape_cast %76 : vector<1x128x256xbf16> to vector<128x256xbf16>
    %78 = vector.shape_cast %74 : vector<128x256xbf16> to vector<1x128x256xbf16>
    tpu.vector_store %arg12[%75, %c0_41, %c0_42], %78 {strides = array<i32>} : memref<2x128x256xbf16, #tpu.memory_space<vmem>>, vector<1x128x256xbf16>,
    %79 = arith.index_cast %c0_i32_25 : i32 to index
    %c0_43 = arith.constant 0 : index
    %c0_44 = arith.constant 0 : index
    %80 = vector.load %arg13[%79, %c0_43, %c0_44] : memref<2x1x256xf32, #tpu.memory_space<vmem>>, vector<1x1x256xf32>
    %81 = vector.shape_cast %80 : vector<1x1x256xf32> to vector<1x256xf32>
    %82 = vector.shape_cast %61 : vector<1x256xf32> to vector<1x1x256xf32>
    tpu.vector_store %arg13[%79, %c0_43, %c0_44], %82 {strides = array<i32>} : memref<2x1x256xf32, #tpu.memory_space<vmem>>, vector<1x1x256xf32>,
    %c1_i32_45 = arith.constant 1 : i32
    %c128_i32_46 = arith.constant 128 : i32
    %83 = arith.muli %c1_i32_45, %c128_i32_46 : i32
    %84 = tpu.assume_multiple %83, 128 : i32
    %c0_47 = arith.constant 0 : index
    %85 = arith.index_cast %84 : i32 to index
    %86 = vector.load %arg8[%c0_47, %85] : memref<2x256xbf16, #tpu.memory_space<vmem>>, vector<2x128xbf16>
    %c0_48 = arith.constant 0 : index
    %c0_49 = arith.constant 0 : index
    %87 = vector.load %arg9[%c0_48, %c0_49] : memref<2x256xbf16, #tpu.memory_space<vmem>>, vector<2x256xbf16>
    %cst_50 = arith.constant dense<0.000000e+00> : vector<128x256xf32>
    %88 = tpu.matmul %86, %87, %cst_50 {dimension_numbers = #tpu.dot_dimension_numbers<[0], [0], [1], [1], [0, 1, 1, 1], [], []>} : vector<2x128xbf16>, vector<2x256xbf16>, vector<128x256xf32> -> vector<128x256xf32>
    %c0_51 = arith.constant 0 : index
    %c0_52 = arith.constant 0 : index
    %89 = vector.load %arg10[%c0_51, %c0_52] : memref<1x256xf32, #tpu.memory_space<vmem>>, vector<1x256xf32>
    %cst_53 = arith.constant dense<0xFF800000> : vector<256xf32>
    %90 = vector.multi_reduction <maximumf>, %88, %cst_53 [0] : vector<128x256xf32> to vector<256xf32>
    %91 = vector.shape_cast %90 : vector<256xf32> to vector<1x256xf32>
    %92 = arith.maximumf %89, %91 : vector<1x256xf32>
    %93 = vector.broadcast %92 : vector<1x256xf32> to vector<128x256xf32>
    %94 = arith.subf %88, %93 : vector<128x256xf32>
    %95 = math.exp %94 : vector<128x256xf32>
    %c0_54 = arith.constant 0 : index
    %c0_55 = arith.constant 0 : index
    %96 = vector.load %arg11[%c0_54, %c0_55] : memref<1x256xf32, #tpu.memory_space<vmem>>, vector<1x256xf32>
    %97 = arith.subf %89, %92 : vector<1x256xf32>
    %98 = math.exp %97 : vector<1x256xf32>
    %99 = arith.mulf %96, %98 : vector<1x256xf32>
    %cst_56 = arith.constant dense<0.000000e+00> : vector<256xf32>
    %100 = vector.multi_reduction <add>, %95, %cst_56 [0] : vector<128x256xf32> to vector<256xf32>
    %101 = vector.shape_cast %100 : vector<256xf32> to vector<1x256xf32>
    %102 = arith.addf %99, %101 : vector<1x256xf32>
    %c0_57 = arith.constant 0 : index
    %c0_58 = arith.constant 0 : index
    %103 = vector.load %arg11[%c0_57, %c0_58] : memref<1x256xf32, #tpu.memory_space<vmem>>, vector<1x256xf32>
    tpu.vector_store %arg11[%c0_57, %c0_58], %102 {strides = array<i32>} : memref<1x256xf32, #tpu.memory_space<vmem>>, vector<1x256xf32>,
    %c0_59 = arith.constant 0 : index
    %c0_60 = arith.constant 0 : index
    %104 = vector.load %arg10[%c0_59, %c0_60] : memref<1x256xf32, #tpu.memory_space<vmem>>, vector<1x256xf32>
    tpu.vector_store %arg10[%c0_59, %c0_60], %92 {strides = array<i32>} : memref<1x256xf32, #tpu.memory_space<vmem>>, vector<1x256xf32>,
    %105 = arith.truncf %95 : vector<128x256xf32> to vector<128x256xbf16>
    %106 = arith.index_cast %c1_i32_45 : i32 to index
    %c0_61 = arith.constant 0 : index
    %c0_62 = arith.constant 0 : index
    %107 = vector.load %arg12[%106, %c0_61, %c0_62] : memref<2x128x256xbf16, #tpu.memory_space<vmem>>, vector<1x128x256xbf16>
    %108 = vector.shape_cast %107 : vector<1x128x256xbf16> to vector<128x256xbf16>
    %109 = vector.shape_cast %105 : vector<128x256xbf16> to vector<1x128x256xbf16>
    tpu.vector_store %arg12[%106, %c0_61, %c0_62], %109 {strides = array<i32>} : memref<2x128x256xbf16, #tpu.memory_space<vmem>>, vector<1x128x256xbf16>,
    %110 = arith.index_cast %c1_i32_45 : i32 to index
    %c0_63 = arith.constant 0 : index
    %c0_64 = arith.constant 0 : index
    %111 = vector.load %arg13[%110, %c0_63, %c0_64] : memref<2x1x256xf32, #tpu.memory_space<vmem>>, vector<1x1x256xf32>
    %112 = vector.shape_cast %111 : vector<1x1x256xf32> to vector<1x256xf32>
    %113 = vector.shape_cast %92 : vector<1x256xf32> to vector<1x1x256xf32>
    tpu.vector_store %arg13[%110, %c0_63, %c0_64], %113 {strides = array<i32>} : memref<2x1x256xf32, #tpu.memory_space<vmem>>, vector<1x1x256xf32>,
    %c2_i32_65 = arith.constant 2 : i32
    %c0_66 = arith.constant 0 : index
    %c0_67 = arith.constant 0 : index
    %114 = vector.load %arg11[%c0_66, %c0_67] : memref<1x256xf32, #tpu.memory_space<vmem>>, vector<1x256xf32>
    %115 = tpu.reciprocal %114 {approx = true} : vector<1x256xf32> -> vector<1x256xf32>
    %c0_68 = arith.constant 0 : index
    %c0_69 = arith.constant 0 : index
    %116 = vector.load %arg7[%c0_68, %c0_69] : memref<2x256xbf16, #tpu.memory_space<vmem>>, vector<2x256xbf16>
    %117 = arith.extf %116 : vector<2x256xbf16> to vector<2x256xf32>
    %118 = vector.broadcast %115 : vector<1x256xf32> to vector<2x256xf32>
    %119 = arith.mulf %117, %118 : vector<2x256xf32>
    %120 = arith.truncf %119 : vector<2x256xf32> to vector<2x256xbf16>
    %c0_70 = arith.constant 0 : index
    %c0_71 = arith.constant 0 : index
    %121 = vector.load %arg7[%c0_70, %c0_71] : memref<2x256xbf16, #tpu.memory_space<vmem>>, vector<2x256xbf16>
    tpu.vector_store %arg7[%c0_70, %c0_71], %120 {strides = array<i32>} : memref<2x256xbf16, #tpu.memory_space<vmem>>, vector<2x256xbf16>,
    %c0_i32_72 = arith.constant 0 : i32
    %c128_i32_73 = arith.constant 128 : i32
    %122 = arith.muli %c0_i32_72, %c128_i32_73 : i32
    %123 = tpu.assume_multiple %122, 128 : i32
    %124 = arith.index_cast %c0_i32_72 : i32 to index
    %c0_74 = arith.constant 0 : index
    %c0_75 = arith.constant 0 : index
    %125 = vector.load %arg13[%124, %c0_74, %c0_75] : memref<2x1x256xf32, #tpu.memory_space<vmem>>, vector<1x1x256xf32>
    %126 = vector.shape_cast %125 : vector<1x1x256xf32> to vector<1x256xf32>
    %c0_76 = arith.constant 0 : index
    %c0_77 = arith.constant 0 : index
    %127 = vector.load %arg10[%c0_76, %c0_77] : memref<1x256xf32, #tpu.memory_space<vmem>>, vector<1x256xf32>
    %128 = arith.subf %126, %127 : vector<1x256xf32>
    %129 = math.exp %128 : vector<1x256xf32>
    %130 = arith.index_cast %c0_i32_72 : i32 to index
    %c0_78 = arith.constant 0 : index
    %c0_79 = arith.constant 0 : index
    %131 = vector.load %arg12[%130, %c0_78, %c0_79] : memref<2x128x256xbf16, #tpu.memory_space<vmem>>, vector<1x128x256xbf16>
    %132 = vector.shape_cast %131 : vector<1x128x256xbf16> to vector<128x256xbf16>
    %133 = arith.truncf %129 : vector<1x256xf32> to vector<1x256xbf16>
    %134 = vector.broadcast %133 : vector<1x256xbf16> to vector<128x256xbf16>
    %135 = arith.mulf %132, %134 : vector<128x256xbf16>
    %c0_80 = arith.constant 0 : index
    %c0_81 = arith.constant 0 : index
    %136 = vector.load %arg7[%c0_80, %c0_81] : memref<2x256xbf16, #tpu.memory_space<vmem>>, vector<2x256xbf16>
    %cst_82 = arith.constant dense<0.000000e+00> : vector<2x128xf32>
    %137 = tpu.matmul %136, %135, %cst_82 {dimension_numbers = #tpu.dot_dimension_numbers<[1], [1], [0], [0], [0, 0, 1, 0], [], []>} : vector<2x256xbf16>, vector<128x256xbf16>, vector<2x128xf32> -> vector<2x128xf32>
    %c0_83 = arith.constant 0 : index
    %c0_84 = arith.constant 0 : index
    %138 = vector.load %arg4[%c0_83, %c0_84] : memref<4x2xf32, #tpu.memory_space<vmem>>, vector<4x2xf32>
    %139 = arith.truncf %138 : vector<4x2xf32> to vector<4x2xbf16>
    %140 = arith.truncf %137 : vector<2x128xf32> to vector<2x128xbf16>
    %cst_85 = arith.constant dense<0.000000e+00> : vector<4x128xf32>
    %141 = tpu.matmul %139, %140, %cst_85 {dimension_numbers = #tpu.dot_dimension_numbers<[1], [0], [0], [1], [0, 0, 1, 1], [], []>} : vector<4x2xbf16>, vector<2x128xbf16>, vector<4x128xf32> -> vector<4x128xf32>
    %c0_86 = arith.constant 0 : index
    %c0_87 = arith.constant 0 : index
    %142 = vector.load %arg5[%c0_86, %c0_87] : memref<4x1xf32, #tpu.memory_space<vmem>>, vector<4x1xf32>
    %143 = vector.broadcast %142 : vector<4x1xf32> to vector<4x128xf32>
    %144 = arith.addf %141, %143 : vector<4x128xf32>
    %c0_88 = arith.constant 0 : index
    %c0_89 = arith.constant 0 : index
    %145 = arith.index_cast %123 : i32 to index
    %146 = vector.load %arg1[%c0_88, %c0_89, %145] : memref<1x4x256xf32, #tpu.memory_space<vmem>>, vector<1x4x128xf32>
    %147 = vector.shape_cast %146 : vector<1x4x128xf32> to vector<4x128xf32>
    %148 = arith.addf %144, %147 : vector<4x128xf32>
    %c0_90 = arith.constant 0 : index
    %c0_91 = arith.constant 0 : index
    %149 = arith.index_cast %123 : i32 to index
    %150 = vector.load %arg6[%c0_90, %c0_91, %149] : memref<1x4x256xf32, #tpu.memory_space<vmem>>, vector<1x4x128xf32>
    %151 = vector.shape_cast %150 : vector<1x4x128xf32> to vector<4x128xf32>
    %152 = vector.shape_cast %148 : vector<4x128xf32> to vector<1x4x128xf32>
    tpu.vector_store %arg6[%c0_90, %c0_91, %149], %152 {strides = array<i32>} : memref<1x4x256xf32, #tpu.memory_space<vmem>>, vector<1x4x128xf32>,
    %c1_i32_92 = arith.constant 1 : i32
    %c128_i32_93 = arith.constant 128 : i32
    %153 = arith.muli %c1_i32_92, %c128_i32_93 : i32
    %154 = tpu.assume_multiple %153, 128 : i32
    %155 = arith.index_cast %c1_i32_92 : i32 to index
    %c0_94 = arith.constant 0 : index
    %c0_95 = arith.constant 0 : index
    %156 = vector.load %arg13[%155, %c0_94, %c0_95] : memref<2x1x256xf32, #tpu.memory_space<vmem>>, vector<1x1x256xf32>
    %157 = vector.shape_cast %156 : vector<1x1x256xf32> to vector<1x256xf32>
    %c0_96 = arith.constant 0 : index
    %c0_97 = arith.constant 0 : index
    %158 = vector.load %arg10[%c0_96, %c0_97] : memref<1x256xf32, #tpu.memory_space<vmem>>, vector<1x256xf32>
    %159 = arith.subf %157, %158 : vector<1x256xf32>
    %160 = math.exp %159 : vector<1x256xf32>
    %161 = arith.index_cast %c1_i32_92 : i32 to index
    %c0_98 = arith.constant 0 : index
    %c0_99 = arith.constant 0 : index
    %162 = vector.load %arg12[%161, %c0_98, %c0_99] : memref<2x128x256xbf16, #tpu.memory_space<vmem>>, vector<1x128x256xbf16>
    %163 = vector.shape_cast %162 : vector<1x128x256xbf16> to vector<128x256xbf16>
    %164 = arith.truncf %160 : vector<1x256xf32> to vector<1x256xbf16>
    %165 = vector.broadcast %164 : vector<1x256xbf16> to vector<128x256xbf16>
    %166 = arith.mulf %163, %165 : vector<128x256xbf16>
    %c0_100 = arith.constant 0 : index
    %c0_101 = arith.constant 0 : index
    %167 = vector.load %arg7[%c0_100, %c0_101] : memref<2x256xbf16, #tpu.memory_space<vmem>>, vector<2x256xbf16>
    %cst_102 = arith.constant dense<0.000000e+00> : vector<2x128xf32>
    %168 = tpu.matmul %167, %166, %cst_102 {dimension_numbers = #tpu.dot_dimension_numbers<[1], [1], [0], [0], [0, 0, 1, 0], [], []>} : vector<2x256xbf16>, vector<128x256xbf16>, vector<2x128xf32> -> vector<2x128xf32>
    %c0_103 = arith.constant 0 : index
    %c0_104 = arith.constant 0 : index
    %169 = vector.load %arg4[%c0_103, %c0_104] : memref<4x2xf32, #tpu.memory_space<vmem>>, vector<4x2xf32>
    %170 = arith.truncf %169 : vector<4x2xf32> to vector<4x2xbf16>
    %171 = arith.truncf %168 : vector<2x128xf32> to vector<2x128xbf16>
    %cst_105 = arith.constant dense<0.000000e+00> : vector<4x128xf32>
    %172 = tpu.matmul %170, %171, %cst_105 {dimension_numbers = #tpu.dot_dimension_numbers<[1], [0], [0], [1], [0, 0, 1, 1], [], []>} : vector<4x2xbf16>, vector<2x128xbf16>, vector<4x128xf32> -> vector<4x128xf32>
    %c0_106 = arith.constant 0 : index
    %c0_107 = arith.constant 0 : index
    %173 = vector.load %arg5[%c0_106, %c0_107] : memref<4x1xf32, #tpu.memory_space<vmem>>, vector<4x1xf32>
    %174 = vector.broadcast %173 : vector<4x1xf32> to vector<4x128xf32>
    %175 = arith.addf %172, %174 : vector<4x128xf32>
    %c0_108 = arith.constant 0 : index
    %c0_109 = arith.constant 0 : index
    %176 = arith.index_cast %154 : i32 to index
    %177 = vector.load %arg1[%c0_108, %c0_109, %176] : memref<1x4x256xf32, #tpu.memory_space<vmem>>, vector<1x4x128xf32>
    %178 = vector.shape_cast %177 : vector<1x4x128xf32> to vector<4x128xf32>
    %179 = arith.addf %175, %178 : vector<4x128xf32>
    %c0_110 = arith.constant 0 : index
    %c0_111 = arith.constant 0 : index
    %180 = arith.index_cast %154 : i32 to index
    %181 = vector.load %arg6[%c0_110, %c0_111, %180] : memref<1x4x256xf32, #tpu.memory_space<vmem>>, vector<1x4x128xf32>
    %182 = vector.shape_cast %181 : vector<1x4x128xf32> to vector<4x128xf32>
    %183 = vector.shape_cast %179 : vector<4x128xf32> to vector<1x4x128xf32>
    tpu.vector_store %arg6[%c0_110, %c0_111, %180], %183 {strides = array<i32>} : memref<1x4x256xf32, #tpu.memory_space<vmem>>, vector<1x4x128xf32>,
    %c2_i32_112 = arith.constant 2 : i32
    return
  }
  func.func @transform_0(%arg0: i32) -> (i32, i32, i32) {
    %c0_i32 = arith.constant 0 : i32
    %c0_i32_0 = arith.constant 0 : i32
    %c0_i32_1 = arith.constant 0 : i32
    return %arg0, %c0_i32, %c0_i32_0 : i32, i32, i32
  }
  func.func @transform_1(%arg0: i32) -> (i32, i32) {
    %c0_i32 = arith.constant 0 : i32
    %c0_i32_0 = arith.constant 0 : i32
    %c0_i32_1 = arith.constant 0 : i32
    return %c0_i32, %c0_i32_0 : i32, i32
  }
  func.func @transform_2(%arg0: i32) -> (i32, i32) {
    %c0_i32 = arith.constant 0 : i32
    %c0_i32_0 = arith.constant 0 : i32
    %c0_i32_1 = arith.constant 0 : i32
    return %c0_i32, %c0_i32_0 : i32, i32
  }
  func.func @transform_3(%arg0: i32) -> (i32, i32) {
    %c0_i32 = arith.constant 0 : i32
    %c0_i32_0 = arith.constant 0 : i32
    %c0_i32_1 = arith.constant 0 : i32
    return %c0_i32, %c0_i32_0 : i32, i32
  }
  func.func @transform_4(%arg0: i32) -> (i32, i32) {
    %c0_i32 = arith.constant 0 : i32
    %c0_i32_0 = arith.constant 0 : i32
    %c0_i32_1 = arith.constant 0 : i32
    return %c0_i32, %c0_i32_0 : i32, i32
  }
  func.func @transform_5(%arg0: i32) -> (i32, i32, i32) {
    %c0_i32 = arith.constant 0 : i32
    %c0_i32_0 = arith.constant 0 : i32
    %c0_i32_1 = arith.constant 0 : i32
    return %arg0, %c0_i32, %c0_i32_0 : i32, i32, i32
  }
}

</mosaic_0001>

<llo_original>
// kernel: tpu_custom_call.1
$region0: #{tpu_custom_call.1}
  #allocation0 [shape = 'u32[]', space=smem, size = 0x4, offset = 0x4, fixed_abs, tag = 'smem constant byte address 0x4 - core index']
  #allocation1 [shape = 'u32[144,128]{1,0:T(1,128)}', space=vmem, size = 0x12000, scoped, tag = 'internal scratch']
  #allocation2 [shape = 'bf16[2,256]{1,0:T(2,128)(2,1)}', space=vmem, size = 0x400, scoped, tag = 'scratch operand']
  #allocation3 [shape = 'bf16[2,256]{1,0:T(2,128)(2,1)}', space=vmem, size = 0x400, scoped, tag = 'scratch operand']
  #allocation4 [shape = 'bf16[2,256]{1,0:T(2,128)(2,1)}', space=vmem, size = 0x400, scoped, tag = 'scratch operand']
  #allocation5 [shape = 'f32[1,256]{1,0:T(1,128)}', space=vmem, size = 0x400, scoped, tag = 'scratch operand']
  #allocation6 [shape = 'f32[1,256]{1,0:T(1,128)}', space=vmem, size = 0x400, scoped, tag = 'scratch operand']
  #allocation7 [shape = 'bf16[2,128,256]{2,1,0:T(16,128)(2,1)}', space=vmem, size = 0x20000, scoped, tag = 'scratch operand']
  #allocation8 [shape = 'f32[2,1,256]{2,1,0:T(1,128)}', space=vmem, size = 0x800, scoped, tag = 'scratch operand']
  %s0 = inlined_call_operand.vmem [shape: f32[2,4,256], index: 0, kind: input, shape index: {}]
  %s1 = inlined_call_operand.vmem [shape: f32[6,4], index: 1, kind: input, shape index: {}]
  %s2 = inlined_call_operand.vmem [shape: f32[6,1], index: 2, kind: input, shape index: {}]
  %s3 = inlined_call_operand.vmem [shape: f32[4,2], index: 3, kind: input, shape index: {}]
  %s4 = inlined_call_operand.vmem [shape: f32[4,1], index: 4, kind: input, shape index: {}]
  %s5 = inlined_call_operand.hbm [shape: f32[2,4,256], index: 5, kind: output, shape index: {}]
  %s6 = sld [smem:[#allocation0]]
  $region53: #{tpu_custom_call.1} parent=0
    _
  %s8 = ssub.s32 1, %s6
  %s9 = scalar_select 0, %s8, %s6
  $region1: #{tpu_custom_call.1} parent=0
    #allocation9 [shape = 'u8[8192]{0}', space=vmem, size = 0x2000, scoped, tag = 'output window, operand 0']
    #allocation10 [shape = 's32[2]{0}', space=sflag, size = 0x8, scoped, tag = 'scoped memory for tpu_custom_call.1']
    %10 = vsyncpa [#allocation10], 0
    %s11 = scalar_lea.sflag [#allocation10], 1
    %12 = vsyncpa %s11, 0
    loop: start=0, step=1, limit=4
    $region2: #{tpu_custom_call.1} parent=1 // loop_pre_header
      _
    $region3: #{tpu_custom_call.1} parent=1 // loop_header
      %s14 = sphi 0, %s18
      %p15 = scmp.ge.s32.totalorder %s14, 4
      %s24 = sphi 0, %s26
      %s27 = sphi 0, %s24
      %s28 = sphi 0, %s27
      %s44 = sphi 0, %s28
      %s48 = sphi 0, %s48
      %s50 = sphi 0, %s48
      %s51 = sphi 0, %s50
      %s65 = sphi 0, %s51
      %s69 = sphi 0, %s69
      %s71 = sphi 0, %s69
      %s72 = sphi 0, %s71
      %s86 = sphi 0, %s72
      %s90 = sphi 0, %s90
      %s92 = sphi 0, %s90
      %s93 = sphi 0, %s92
      %s107 = sphi 0, %s93
      %s111 = sphi 0, %s111
      %s113 = sphi 0, %s111
      %s114 = sphi 0, %s113
      %s128 = sphi 0, %s114
      %s134 = sphi 0, %s136
      %s137 = sphi 0, %s134
      %s138 = sphi 0, %s137
      %s154 = sphi 0, %s138
    $region4: #{tpu_custom_call.1} parent=1 // loop_header_branch
      %17 = sbr.rel (%p15) target = $region8
    $region5: #{tpu_custom_call.1} parent=1 // loop_body
      %s19 = ssub.s32 %s14, 1
      %s20 = ssub.s32 %s14, 2
      %s21 = sadd.s32 %s14, 1
      %s22 = ssub.s32 %s14, %s21
      %p23 = scmp.eq.s32.totalorder %s22, 0
      %s25 = sadd.s32 %s24, 1
      %s26 = scalar_select %p23, %s24, %s25
      %p29 = pneg %p23
      %p30 = scmp.eq.s32.totalorder %s14, 1
      %p31 = por %p29, %p30
      %p32 = scmp.ne.s32.totalorder %s24, %s27
      %p33 = scmp.eq.s32.totalorder %s14, 0
      %p34 = por %p32, %p33
      %p35 = scmp.ne.s32.totalorder %s24, %s27
      %p36 = scmp.eq.s32.totalorder %s19, 1
      %p37 = por %p35, %p36
      %p38 = scmp.ne.s32.totalorder %s27, %s28
      %p39 = scmp.eq.s32.totalorder %s19, 0
      %p40 = por %p38, %p39
      %p41 = scmp.ne.s32.totalorder %s27, %s28
      %p42 = scmp.eq.s32.totalorder %s20, 1
      %p43 = por %p41, %p42
      %p45 = scmp.ne.s32.totalorder %s28, %s44
      %p46 = scmp.eq.s32.totalorder %s20, 0
      %p47 = por %p45, %p46
      %s49 = sadd.s32 %s48, 1
      %p52 = scmp.eq.s32.totalorder %s14, 1
      %p53 = scmp.ne.s32.totalorder %s48, %s50
      %p54 = scmp.eq.s32.totalorder %s14, 0
      %p55 = por %p53, %p54
      %p56 = scmp.ne.s32.totalorder %s48, %s50
      %p57 = scmp.eq.s32.totalorder %s19, 1
      %p58 = por %p56, %p57
      %p59 = scmp.ne.s32.totalorder %s50, %s51
      %p60 = scmp.eq.s32.totalorder %s19, 0
      %p61 = por %p59, %p60
      %p62 = scmp.ne.s32.totalorder %s50, %s51
      %p63 = scmp.eq.s32.totalorder %s20, 1
      %p64 = por %p62, %p63
      %p66 = scmp.ne.s32.totalorder %s51, %s65
      %p67 = scmp.eq.s32.totalorder %s20, 0
      %p68 = por %p66, %p67
      %s70 = sadd.s32 %s69, 1
      %p73 = scmp.eq.s32.totalorder %s14, 1
      %p74 = scmp.ne.s32.totalorder %s69, %s71
      %p75 = scmp.eq.s32.totalorder %s14, 0
      %p76 = por %p74, %p75
      %p77 = scmp.ne.s32.totalorder %s69, %s71
      %p78 = scmp.eq.s32.totalorder %s19, 1
      %p79 = por %p77, %p78
      %p80 = scmp.ne.s32.totalorder %s71, %s72
      %p81 = scmp.eq.s32.totalorder %s19, 0
      %p82 = por %p80, %p81
      %p83 = scmp.ne.s32.totalorder %s71, %s72
      %p84 = scmp.eq.s32.totalorder %s20, 1
      %p85 = por %p83, %p84
      %p87 = scmp.ne.s32.totalorder %s72, %s86
      %p88 = scmp.eq.s32.totalorder %s20, 0
      %p89 = por %p87, %p88
      %s91 = sadd.s32 %s90, 1
      %p94 = scmp.eq.s32.totalorder %s14, 1
      %p95 = scmp.ne.s32.totalorder %s90, %s92
      %p96 = scmp.eq.s32.totalorder %s14, 0
      %p97 = por %p95, %p96
      %p98 = scmp.ne.s32.totalorder %s90, %s92
      %p99 = scmp.eq.s32.totalorder %s19, 1
      %p100 = por %p98, %p99
      %p101 = scmp.ne.s32.totalorder %s92, %s93
      %p102 = scmp.eq.s32.totalorder %s19, 0
      %p103 = por %p101, %p102
      %p104 = scmp.ne.s32.totalorder %s92, %s93
      %p105 = scmp.eq.s32.totalorder %s20, 1
      %p106 = por %p104, %p105
      %p108 = scmp.ne.s32.totalorder %s93, %s107
      %p109 = scmp.eq.s32.totalorder %s20, 0
      %p110 = por %p108, %p109
      %s112 = sadd.s32 %s111, 1
      %p115 = scmp.eq.s32.totalorder %s14, 1
      %p116 = scmp.ne.s32.totalorder %s111, %s113
      %p117 = scmp.eq.s32.totalorder %s14, 0
      %p118 = por %p116, %p117
      %p119 = scmp.ne.s32.totalorder %s111, %s113
      %p120 = scmp.eq.s32.totalorder %s19, 1
      %p121 = por %p119, %p120
      %p122 = scmp.ne.s32.totalorder %s113, %s114
      %p123 = scmp.eq.s32.totalorder %s19, 0
      %p124 = por %p122, %p123
      %p125 = scmp.ne.s32.totalorder %s113, %s114
      %p126 = scmp.eq.s32.totalorder %s20, 1
      %p127 = por %p125, %p126
      %p129 = scmp.ne.s32.totalorder %s114, %s128
      %p130 = scmp.eq.s32.totalorder %s20, 0
      %p131 = por %p129, %p130
      %s132 = ssub.s32 %s14, %s21
      %p133 = scmp.eq.s32.totalorder %s132, 0
      %s135 = sadd.s32 %s134, 1
      %s136 = scalar_select %p133, %s134, %s135
      %p139 = pneg %p133
      %p140 = scmp.eq.s32.totalorder %s14, 1
      %p141 = por %p139, %p140
      %p142 = scmp.ne.s32.totalorder %s134, %s137
      %p143 = scmp.eq.s32.totalorder %s14, 0
      %p144 = por %p142, %p143
      %p145 = scmp.ne.s32.totalorder %s134, %s137
      %p146 = scmp.eq.s32.totalorder %s19, 1
      %p147 = por %p145, %p146
      %p148 = scmp.ne.s32.totalorder %s137, %s138
      %p149 = scmp.eq.s32.totalorder %s19, 0
      %p150 = por %p148, %p149
      %p151 = scmp.ne.s32.totalorder %s137, %s138
      %p152 = scmp.eq.s32.totalorder %s20, 1
      %p153 = por %p151, %p152
      %p155 = scmp.ne.s32.totalorder %s138, %s154
      %p156 = scmp.eq.s32.totalorder %s20, 0
      %p157 = por %p155, %p156
      %p158 = scmp.le.s32.totalorder 1, %s14
      %p159 = scmp.lt.s32.totalorder %s14, 3
      %p160 = pnand %p158, %p159
      %p161 = pneg %p160
      // Predicated region
      $region9: #{tpu_custom_call.1} parent=5 // pred_check
        _
      $region10: #{tpu_custom_call.1} parent=5 // pred_check_branch
        %163 = sbr.rel (%p160) target = $region12
      $region11: #{tpu_custom_call.1} parent=5 // pred_region
        %s164 = ssub.s32 %s14, 1
        // Predicated region
        $region13: #{tpu_custom_call.1} parent=11 // pred_check
          %p165 = pneg %p61
        $region14: #{tpu_custom_call.1} parent=11 // pred_check_branch
          %167 = sbr.rel (%p165) target = $region16
        $region15: #{tpu_custom_call.1} parent=11 // pred_region
          _
        $region16: #{tpu_custom_call.1} parent=11 // pred_fallthru
          _
        // Predicated region
        $region17: #{tpu_custom_call.1} parent=11 // pred_check
          %p168 = pneg %p82
        $region18: #{tpu_custom_call.1} parent=11 // pred_check_branch
          %170 = sbr.rel (%p168) target = $region20
        $region19: #{tpu_custom_call.1} parent=11 // pred_region
          _
        $region20: #{tpu_custom_call.1} parent=11 // pred_fallthru
          _
        // Predicated region
        $region21: #{tpu_custom_call.1} parent=11 // pred_check
          %p171 = pneg %p103
        $region22: #{tpu_custom_call.1} parent=11 // pred_check_branch
          %173 = sbr.rel (%p171) target = $region24
        $region23: #{tpu_custom_call.1} parent=11 // pred_region
          _
        $region24: #{tpu_custom_call.1} parent=11 // pred_fallthru
          _
        // Predicated region
        $region25: #{tpu_custom_call.1} parent=11 // pred_check
          %p174 = pneg %p124
        $region26: #{tpu_custom_call.1} parent=11 // pred_check_branch
          %176 = sbr.rel (%p174) target = $region28
        $region27: #{tpu_custom_call.1} parent=11 // pred_region
          _
        $region28: #{tpu_custom_call.1} parent=11 // pred_fallthru
          _
      $region12: #{tpu_custom_call.1} parent=5 // pred_fallthru
        _
      %p177 = scmp.lt.s32.totalorder %s14, 2
      // Predicated region
      $region29: #{tpu_custom_call.1} parent=5 // pred_check
        %p178 = pneg %p177
      $region30: #{tpu_custom_call.1} parent=5 // pred_check_branch
        %180 = sbr.rel (%p178) target = $region32
      $region31: #{tpu_custom_call.1} parent=5 // pred_region
        // Predicated region
        $region33: #{tpu_custom_call.1} parent=31 // pred_check
          %p181 = pneg %p34
        $region34: #{tpu_custom_call.1} parent=31 // pred_check_branch
          %183 = sbr.rel (%p181) target = $region36
        $region35: #{tpu_custom_call.1} parent=31 // pred_region
          %p184 = scmp.lt.s32.totalorder %s14, 1
          %s185 = scalar_select %p184, %s14, 1
          %s186 = smul.addr %s185, 2
          %s187 = smul.addr %s186, 4
          %s188 = scalar_lea.vmem %s0, %s187
        $region36: #{tpu_custom_call.1} parent=31 // pred_fallthru
          _
      $region32: #{tpu_custom_call.1} parent=5 // pred_fallthru
        _
      %p189 = scmp.le.s32.totalorder 1, %s14
      %p190 = scmp.lt.s32.totalorder %s14, 3
      %p191 = pnand %p189, %p190
      %p192 = pneg %p191
      // Predicated region
      $region37: #{tpu_custom_call.1} parent=5 // pred_check
        _
      $region38: #{tpu_custom_call.1} parent=5 // pred_check_branch
        %194 = sbr.rel (%p191) target = $region40
      $region39: #{tpu_custom_call.1} parent=5 // pred_region
        %s195 = ssub.s32 %s14, 1
        %p196 = scmp.lt.s32.totalorder %s19, 1
        %s197 = scalar_select %p196, %s19, 1
        %s198 = smul.addr %s197, 2
        %s199 = smul.addr %s198, 4
        %s200 = scalar_lea.vmem %s0, %s199
        %p201 = pneg %p40
        %p202 = pneg %p37
        %p203 = pneg %p61
        %p204 = pneg %p58
        %p205 = pneg %p82
        %p206 = pneg %p79
        %p207 = pneg %p103
        %p208 = pneg %p100
        %p209 = pneg %p124
        %p210 = pneg %p121
        %p211 = pneg %p150
        %p212 = pneg %p147
        %s213 = sand.u32 %s137, 1
        %s214 = scalar_lea.sflag [#allocation10], %s213
        %s215 = sand.u32 %s137, 1
        %s216 = smul.addr %s215, 8
        %s217 = scalar_lea.vmem [#allocation9], %s216
        %p218 = scmp.lt.s32.totalorder %s19, 1
        %s219 = scalar_select %p218, %s19, 1
        %s220 = smul.addr %s219, 2
        %s221 = smul.addr %s220, 4
        %s222 = scalar_lea.vmem %s0, %s221
        %v224 = vld [vmem:[%s222] sm:$0xf]
        %v225 = vpack.c.bf16 %v224, %v224
        %v226 = vld [vmem:[%s1] sm:$0x3f]
        %v227 = vpack.c.bf16 %v226, %v226
        %v228 = vld [vmem:[%s2] sm:$0x3f]
        %230 = vset.pattern.permute.xlu0 0
        %231 = vperm.xlu0 %230, %v228
        %v232 = vpop.permute.xlu0 %231
        %vm234 = vcmask 31744
        %v236 = vsel %vm234, %v227, 0
        %vm238 = vcmask 1041408
        %v240 = vsel %vm238, %v225, 0
        %242 = vmatprep.subr.bf16.mxu0 0
        %243 = vmatpush1.bf16.msra.mxu0 %v240
        %244 = vmatprep.subr.bf16.mxu0 0
        %245 = vmatpush1.bf16.msra.mxu0 0
        %246 = vmatprep.subr.bf16.mxu0 0
        %247 = vmatpush1.bf16.msra.mxu0 0
        %248 = vmatprep.subr.bf16.mxu0 0
        %249 = vmatpush1.bf16.msra.mxu0 0
        %250 = vmatprep.subr.bf16.mxu0 0
        %251 = vmatpush1.bf16.msra.mxu0 0
        %252 = vmatprep.subr.bf16.mxu0 0
        %253 = vmatpush1.bf16.msra.mxu0 0
        %254 = vmatprep.subr.bf16.mxu0 0
        %255 = vmatpush1.bf16.msra.mxu0 0
        %256 = vmatprep.subr.bf16.mxu0 0
        %257 = vmatpush1.bf16.msra.mxu0 0
        %258 = vmatprep.subr.bf16.mxu0 0
        %259 = vmatpush1.bf16.msra.mxu0 0
        %260 = vmatprep.subr.bf16.mxu0 0
        %261 = vmatpush1.bf16.msra.mxu0 0
        %262 = vmatprep.subr.bf16.mxu0 0
        %263 = vmatpush1.bf16.msra.mxu0 0
        %264 = vmatprep.subr.bf16.mxu0 0
        %265 = vmatpush1.bf16.msra.mxu0 0
        %266 = vmatprep.subr.bf16.mxu0 0
        %267 = vmatpush1.bf16.msra.mxu0 0
        %268 = vmatprep.subr.bf16.mxu0 0
        %269 = vmatpush1.bf16.msra.mxu0 0
        %270 = vmatprep.subr.bf16.mxu0 0
        %271 = vmatpush1.bf16.msra.mxu0 0
        %272 = vmatprep.subr.bf16.mxu0 0
        %273 = vmatpush1.bf16.msra.mxu0 0
        %274 = vmatprep.mubr.bf16.mxu0 0
        %275 = vmatmul.mubr.bf16.gmra.mrb[0].mxu0 %v236
        %v276 = vpop.f32.mrb[0].mxu0
        %v277 = vadd.f32 %v232, %v276
        %v278 = vpop.f32.mrb[0].mxu0
        %v279 = vpop.f32.mrb[0].mxu0
        %v280 = vpop.f32.mrb[0].mxu0
        %281 = vdwg.mxu0
        %v282 = vpack.c.bf16 %v277, %v277
        %283 = vst [vmem:[#allocation2] sm:$0x1] %v282
        %v286 = vunpack.c.l.s4 1966171168
        %v287 = vunpack.c.0.s8 %v286
        %v288 = vlaneseq
        %v289 = vshrl.u32 %v288, 7
        %v290 = vsub.s32 %v287, %v289
        %v291 = vrot.slane %v282, %v290
        %v292 = vcombine.high %v291, %v291
        %v294 = vunpack.c.l.s4 1966171168
        %v295 = vunpack.c.0.s8 %v294
        %v296 = vlaneseq
        %v297 = vshrl.u32 %v296, 7
        %v298 = vsub.s32 %v295, %v297
        %v299 = vrot.slane %v291, %v298
        %v301 = vunpack.c.l.s4 1966171168
        %v302 = vunpack.c.0.s8 %v301
        %v303 = vlaneseq
        %v304 = vshrl.u32 %v303, 7
        %v305 = vsub.s32 %v302, %v304
        %v306 = vrot.slane %v292, %v305
        %308 = vst [vmem:[#allocation3] sm:$0x1] %v306
        %v309 = vcombine.high %v299, %v299
        %311 = vst [vmem:[#allocation4] sm:$0x1] %v309
        %s312 = scalar_lea.vmem %s222, 4
        %v313 = vld [vmem:[%s312] sm:$0xf]
        %v314 = vpack.c.bf16 %v313, %v313
        %v315 = vld [vmem:[%s1] sm:$0x3f]
        %v316 = vpack.c.bf16 %v315, %v315
        %v317 = vld [vmem:[%s2] sm:$0x3f]
        %319 = vset.pattern.permute.xlu0 0
        %320 = vperm.xlu0 %319, %v317
        %v321 = vpop.permute.xlu0 %320
        %v324 = vsel %vm234, %v316, 0
        %v327 = vsel %vm238, %v314, 0
        %329 = vmatprep.subr.bf16.mxu0 0
        %330 = vmatpush1.bf16.msra.mxu0 %v327
        %331 = vmatprep.subr.bf16.mxu0 0
        %332 = vmatpush1.bf16.msra.mxu0 0
        %333 = vmatprep.subr.bf16.mxu0 0
        %334 = vmatpush1.bf16.msra.mxu0 0
        %335 = vmatprep.subr.bf16.mxu0 0
        %336 = vmatpush1.bf16.msra.mxu0 0
        %337 = vmatprep.subr.bf16.mxu0 0
        %338 = vmatpush1.bf16.msra.mxu0 0
        %339 = vmatprep.subr.bf16.mxu0 0
        %340 = vmatpush1.bf16.msra.mxu0 0
        %341 = vmatprep.subr.bf16.mxu0 0
        %342 = vmatpush1.bf16.msra.mxu0 0
        %343 = vmatprep.subr.bf16.mxu0 0
        %344 = vmatpush1.bf16.msra.mxu0 0
        %345 = vmatprep.subr.bf16.mxu0 0
        %346 = vmatpush1.bf16.msra.mxu0 0
        %347 = vmatprep.subr.bf16.mxu0 0
        %348 = vmatpush1.bf16.msra.mxu0 0
        %349 = vmatprep.subr.bf16.mxu0 0
        %350 = vmatpush1.bf16.msra.mxu0 0
        %351 = vmatprep.subr.bf16.mxu0 0
        %352 = vmatpush1.bf16.msra.mxu0 0
        %353 = vmatprep.subr.bf16.mxu0 0
        %354 = vmatpush1.bf16.msra.mxu0 0
        %355 = vmatprep.subr.bf16.mxu0 0
        %356 = vmatpush1.bf16.msra.mxu0 0
        %357 = vmatprep.subr.bf16.mxu0 0
        %358 = vmatpush1.bf16.msra.mxu0 0
        %359 = vmatprep.subr.bf16.mxu0 0
        %360 = vmatpush1.bf16.msra.mxu0 0
        %361 = vmatprep.mubr.bf16.mxu0 0
        %362 = vmatmul.mubr.bf16.gmra.mrb[0].mxu0 %v324
        %v363 = vpop.f32.mrb[0].mxu0
        %v364 = vadd.f32 %v321, %v363
        %v365 = vpop.f32.mrb[0].mxu0
        %v366 = vpop.f32.mrb[0].mxu0
        %v367 = vpop.f32.mrb[0].mxu0
        %368 = vdwg.mxu0
        %v369 = vpack.c.bf16 %v364, %v364
        %s370 = scalar_lea.vmem [#allocation2], 1
        %371 = vst [vmem:[%s370] sm:$0x1] %v369
        %v374 = vunpack.c.l.s4 1966171168
        %v375 = vunpack.c.0.s8 %v374
        %v376 = vlaneseq
        %v377 = vshrl.u32 %v376, 7
        %v378 = vsub.s32 %v375, %v377
        %v379 = vrot.slane %v369, %v378
        %v380 = vcombine.high %v379, %v379
        %v382 = vunpack.c.l.s4 1966171168
        %v383 = vunpack.c.0.s8 %v382
        %v384 = vlaneseq
        %v385 = vshrl.u32 %v384, 7
        %v386 = vsub.s32 %v383, %v385
        %v387 = vrot.slane %v379, %v386
        %v389 = vunpack.c.l.s4 1966171168
        %v390 = vunpack.c.0.s8 %v389
        %v391 = vlaneseq
        %v392 = vshrl.u32 %v391, 7
        %v393 = vsub.s32 %v390, %v392
        %v394 = vrot.slane %v380, %v393
        %s396 = scalar_lea.vmem [#allocation3], 1
        %397 = vst [vmem:[%s396] sm:$0x1] %v394
        %v398 = vcombine.high %v387, %v387
        %s400 = scalar_lea.vmem [#allocation4], 1
        %401 = vst [vmem:[%s400] sm:$0x1] %v398
        %v402 = vlaneseq
        %vm403 = vcmp.ge.s32.totalorder %v402, 0
        %vm404 = vcmp.lt.s32.totalorder %v402, 256
        %vm405 = vmand %vm403, %vm404
        %406 = vst.msk [vmem:[#allocation5] sm:$0x3] %vm405, -inf
        %407 = vst.msk [vmem:[#allocation6] sm:$0x3] %vm405, 0.0
        %v408 = vld [vmem:[#allocation3] sm:$0x1]
        %v409 = vld [vmem:[#allocation4] sm:$0x3]
        %410 = vxpose.xlu0.c.b16.start [1/8] %v408, 128
        %411 = vxpose.xlu0.c.b16.cont [2/8] 0, 128
        %412 = vxpose.xlu0.c.b16.cont [3/8] 0, 128
        %413 = vxpose.xlu0.c.b16.cont [4/8] 0, 128
        %414 = vxpose.xlu0.c.b16.cont [5/8] 0, 128
        %415 = vxpose.xlu0.c.b16.cont [6/8] 0, 128
        %416 = vxpose.xlu0.c.b16.cont [7/8] 0, 128
        %417 = vxpose.xlu0.c.b16.end [8/8] 0, 128
        %v418 = vpop.trf.xlu0
        %v419 = vpop.trf.xlu0
        %v420 = vpop.trf.xlu0
        %v421 = vpop.trf.xlu0
        %v422 = vpop.trf.xlu0
        %v423 = vpop.trf.xlu0
        %v424 = vpop.trf.xlu0
        %v425 = vpop.trf.xlu0
        %v428 = vunpack.c.l.s4 1966171168
        %v429 = vunpack.c.0.s8 %v428
        %v430 = vlaneseq
        %v431 = vshrl.u32 %v430, 7
        %v432 = vsub.s32 %v429, %v431
        %v433 = vrot.slane %v409, %v432
        %v434 = vcombine.high %v433, %v433
        %v436 = vunpack.c.l.s4 1966171168
        %v437 = vunpack.c.0.s8 %v436
        %v438 = vlaneseq
        %v439 = vshrl.u32 %v438, 7
        %v440 = vsub.s32 %v437, %v439
        %v441 = vrot.slane %v433, %v440
        %v443 = vunpack.c.l.s4 1966171168
        %v444 = vunpack.c.0.s8 %v443
        %v445 = vlaneseq
        %v446 = vshrl.u32 %v445, 7
        %v447 = vsub.s32 %v444, %v446
        %v448 = vrot.slane %v434, %v447
        %vm449 = vcmask 15360
        %v451 = vsel %vm449, %v418, 0
        %v454 = vsel %vm449, %v419, 0
        %v457 = vsel %vm449, %v420, 0
        %v460 = vsel %vm449, %v421, 0
        %v463 = vsel %vm449, %v422, 0
        %v466 = vsel %vm449, %v423, 0
        %v469 = vsel %vm449, %v424, 0
        %v472 = vsel %vm449, %v425, 0
        %vm474 = vcmask 1040384
        %v476 = vsel %vm474, %v441, 0
        %v479 = vsel %vm474, %v448, 0
        %481 = vmatprep.subr.bf16.mxu0 %v479
        %482 = vmatpush1.bf16.msra.mxu0 %v476
        %483 = vmatprep.subr.bf16.mxu0 0
        %484 = vmatpush1.bf16.msra.mxu0 0
        %485 = vmatprep.subr.bf16.mxu0 0
        %486 = vmatpush1.bf16.msra.mxu0 0
        %487 = vmatprep.subr.bf16.mxu0 0
        %488 = vmatpush1.bf16.msra.mxu0 0
        %489 = vmatprep.subr.bf16.mxu0 0
        %490 = vmatpush1.bf16.msra.mxu0 0
        %491 = vmatprep.subr.bf16.mxu0 0
        %492 = vmatpush1.bf16.msra.mxu0 0
        %493 = vmatprep.subr.bf16.mxu0 0
        %494 = vmatpush1.bf16.msra.mxu0 0
        %495 = vmatprep.subr.bf16.mxu0 0
        %496 = vmatpush1.bf16.msra.mxu0 0
        %497 = vmatprep.subr.bf16.mxu0 0
        %498 = vmatpush1.bf16.msra.mxu0 0
        %499 = vmatprep.subr.bf16.mxu0 0
        %500 = vmatpush1.bf16.msra.mxu0 0
        %501 = vmatprep.subr.bf16.mxu0 0
        %502 = vmatpush1.bf16.msra.mxu0 0
        %503 = vmatprep.subr.bf16.mxu0 0
        %504 = vmatpush1.bf16.msra.mxu0 0
        %505 = vmatprep.subr.bf16.mxu0 0
        %506 = vmatpush1.bf16.msra.mxu0 0
        %507 = vmatprep.subr.bf16.mxu0 0
        %508 = vmatpush1.bf16.msra.mxu0 0
        %509 = vmatprep.subr.bf16.mxu0 0
        %510 = vmatpush1.bf16.msra.mxu0 0
        %511 = vmatprep.subr.bf16.mxu0 0
        %512 = vmatpush1.bf16.msra.mxu0 0
        %513 = vmatprep.mubr.bf16.mxu0 0
        %514 = vmatmul.mubr.bf16.gmra.mrb[0].mxu0 %v451
        %v515 = vpop.f32.mrb[0].mxu0
        %v516 = vadd.f32 0.0, %v515
        %v517 = vpop.f32.mrb[0].mxu0
        %v518 = vadd.f32 0.0, %v517
        %v519 = vpop.f32.mrb[0].mxu0
        %v520 = vadd.f32 0.0, %v519
        %v521 = vpop.f32.mrb[0].mxu0
        %v522 = vadd.f32 0.0, %v521
        %523 = vmatprep.mubr.bf16.mxu0 0
        %524 = vmatmul.mubr.bf16.gmra.mrb[0].mxu0 %v454
        %v525 = vpop.f32.mrb[0].mxu0
        %v526 = vadd.f32 0.0, %v525
        %v527 = vpop.f32.mrb[0].mxu0
        %v528 = vadd.f32 0.0, %v527
        %v529 = vpop.f32.mrb[0].mxu0
        %v530 = vadd.f32 0.0, %v529
        %v531 = vpop.f32.mrb[0].mxu0
        %v532 = vadd.f32 0.0, %v531
        %533 = vmatprep.mubr.bf16.mxu0 0
        %534 = vmatmul.mubr.bf16.gmra.mrb[0].mxu0 %v457
        %v535 = vpop.f32.mrb[0].mxu0
        %v536 = vadd.f32 0.0, %v535
        %v537 = vpop.f32.mrb[0].mxu0
        %v538 = vadd.f32 0.0, %v537
        %v539 = vpop.f32.mrb[0].mxu0
        %v540 = vadd.f32 0.0, %v539
        %v541 = vpop.f32.mrb[0].mxu0
        %v542 = vadd.f32 0.0, %v541
        %543 = vmatprep.mubr.bf16.mxu0 0
        %544 = vmatmul.mubr.bf16.gmra.mrb[0].mxu0 %v460
        %v545 = vpop.f32.mrb[0].mxu0
        %v546 = vadd.f32 0.0, %v545
        %v547 = vpop.f32.mrb[0].mxu0
        %v548 = vadd.f32 0.0, %v547
        %v549 = vpop.f32.mrb[0].mxu0
        %v550 = vadd.f32 0.0, %v549
        %v551 = vpop.f32.mrb[0].mxu0
        %v552 = vadd.f32 0.0, %v551
        %553 = vmatprep.mubr.bf16.mxu0 0
        %554 = vmatmul.mubr.bf16.gmra.mrb[0].mxu0 %v463
        %v555 = vpop.f32.mrb[0].mxu0
        %v556 = vadd.f32 0.0, %v555
        %v557 = vpop.f32.mrb[0].mxu0
        %v558 = vadd.f32 0.0, %v557
        %v559 = vpop.f32.mrb[0].mxu0
        %v560 = vadd.f32 0.0, %v559
        %v561 = vpop.f32.mrb[0].mxu0
        %v562 = vadd.f32 0.0, %v561
        %563 = vmatprep.mubr.bf16.mxu0 0
        %564 = vmatmul.mubr.bf16.gmra.mrb[0].mxu0 %v466
        %v565 = vpop.f32.mrb[0].mxu0
        %v566 = vadd.f32 0.0, %v565
        %v567 = vpop.f32.mrb[0].mxu0
        %v568 = vadd.f32 0.0, %v567
        %v569 = vpop.f32.mrb[0].mxu0
        %v570 = vadd.f32 0.0, %v569
        %v571 = vpop.f32.mrb[0].mxu0
        %v572 = vadd.f32 0.0, %v571
        %573 = vmatprep.mubr.bf16.mxu0 0
        %574 = vmatmul.mubr.bf16.gmra.mrb[0].mxu0 %v469
        %v575 = vpop.f32.mrb[0].mxu0
        %v576 = vadd.f32 0.0, %v575
        %v577 = vpop.f32.mrb[0].mxu0
        %v578 = vadd.f32 0.0, %v577
        %v579 = vpop.f32.mrb[0].mxu0
        %v580 = vadd.f32 0.0, %v579
        %v581 = vpop.f32.mrb[0].mxu0
        %v582 = vadd.f32 0.0, %v581
        %583 = vmatprep.mubr.bf16.mxu0 0
        %584 = vmatmul.mubr.bf16.gmra.mrb[0].mxu0 %v472
        %v585 = vpop.f32.mrb[0].mxu0
        %v586 = vadd.f32 0.0, %v585
        %v587 = vpop.f32.mrb[0].mxu0
        %v588 = vadd.f32 0.0, %v587
        %v589 = vpop.f32.mrb[0].mxu0
        %v590 = vadd.f32 0.0, %v589
        %v591 = vpop.f32.mrb[0].mxu0
        %v592 = vadd.f32 0.0, %v591
        %593 = vdwg.mxu0
        %v594 = vld [vmem:[#allocation5] sm:$0x3]
        %v595 = vmax.f32 %v516, %v526
        %v596 = vmax.f32 %v520, %v530
        %v597 = vmax.f32 %v595, %v536
        %v598 = vmax.f32 %v596, %v540
        %v599 = vmax.f32 %v597, %v546
        %v600 = vmax.f32 %v598, %v550
        %v601 = vmax.f32 %v599, %v556
        %v602 = vmax.f32 %v600, %v560
        %v603 = vmax.f32 %v601, %v566
        %v604 = vmax.f32 %v602, %v570
        %v605 = vmax.f32 %v603, %v576
        %v606 = vmax.f32 %v604, %v580
        %v607 = vmax.f32 %v605, %v586
        %v608 = vmax.f32 %v606, %v590
        %v609 = vmax.f32 %v607, %v608
        %v610 = vrot.slane %v609, 4
        %v611 = vmax.f32 %v609, %v610
        %v612 = vrot.slane %v611, 2
        %v613 = vmax.f32 %v611, %v612
        %v614 = vrot.slane %v613, 1
        %v615 = vmax.f32 %v613, %v614
        %v616 = vmax.f32 %v518, %v528
        %v617 = vmax.f32 %v522, %v532
        %v618 = vmax.f32 %v616, %v538
        %v619 = vmax.f32 %v617, %v542
        %v620 = vmax.f32 %v618, %v548
        %v621 = vmax.f32 %v619, %v552
        %v622 = vmax.f32 %v620, %v558
        %v623 = vmax.f32 %v621, %v562
        %v624 = vmax.f32 %v622, %v568
        %v625 = vmax.f32 %v623, %v572
        %v626 = vmax.f32 %v624, %v578
        %v627 = vmax.f32 %v625, %v582
        %v628 = vmax.f32 %v626, %v588
        %v629 = vmax.f32 %v627, %v592
        %v630 = vmax.f32 %v628, %v629
        %v631 = vrot.slane %v630, 4
        %v632 = vmax.f32 %v630, %v631
        %v633 = vrot.slane %v632, 2
        %v634 = vmax.f32 %v632, %v633
        %v635 = vrot.slane %v634, 1
        %v636 = vmax.f32 %v634, %v635
        %v639 = vcombine.low %v615, %v636
        %v641 = vunpack.c.l.s4 1966171168
        %v642 = vunpack.c.0.s8 %v641
        %v643 = vlaneseq
        %v644 = vshrl.u32 %v643, 7
        %v645 = vsub.s32 %v642, %v644
        %v646 = vrot.slane %v639, %v645
        %v648 = vunpack.c.l.s4 1966171168
        %v649 = vunpack.c.0.s8 %v648
        %v650 = vlaneseq
        %v651 = vshrl.u32 %v650, 7
        %v652 = vsub.s32 %v649, %v651
        %v653 = vrot.slane %v646, %v652
        %v655 = vmax.f32 %v594, %v653
        %v657 = vlaneseq
        %v658 = vshrl.u32 %v657, 7
        %v659 = vsub.s32 0, %v658
        %v660 = vrot.slane %v655, %v659
        %v661 = vlaneseq
        %v662 = vshrl.u32 %v661, 7
        %v663 = vsub.s32 1, %v662
        %v664 = vrot.slane %v655, %v663
        %v667 = vsub.f32 %v516, %v660
        %v668 = vsub.f32 %v518, %v664
        %v669 = vsub.f32 %v520, %v660
        %v670 = vsub.f32 %v522, %v664
        %v671 = vsub.f32 %v526, %v660
        %v672 = vsub.f32 %v528, %v664
        %v673 = vsub.f32 %v530, %v660
        %v674 = vsub.f32 %v532, %v664
        %v675 = vsub.f32 %v536, %v660
        %v676 = vsub.f32 %v538, %v664
        %v677 = vsub.f32 %v540, %v660
        %v678 = vsub.f32 %v542, %v664
        %v679 = vsub.f32 %v546, %v660
        %v680 = vsub.f32 %v548, %v664
        %v681 = vsub.f32 %v550, %v660
        %v682 = vsub.f32 %v552, %v664
        %v683 = vsub.f32 %v556, %v660
        %v684 = vsub.f32 %v558, %v664
        %v685 = vsub.f32 %v560, %v660
        %v686 = vsub.f32 %v562, %v664
        %v687 = vsub.f32 %v566, %v660
        %v688 = vsub.f32 %v568, %v664
        %v689 = vsub.f32 %v570, %v660
        %v690 = vsub.f32 %v572, %v664
        %v691 = vsub.f32 %v576, %v660
        %v692 = vsub.f32 %v578, %v664
        %v693 = vsub.f32 %v580, %v660
        %v694 = vsub.f32 %v582, %v664
        %v695 = vsub.f32 %v586, %v660
        %v696 = vsub.f32 %v588, %v664
        %v697 = vsub.f32 %v590, %v660
        %v698 = vsub.f32 %v592, %v664
        %v699 = vmul.f32 %v667, 1.442695
        %v700 = vpow.pop %v699
        %v701 = vmul.f32 %v668, 1.442695
        %v702 = vpow.pop %v701
        %v703 = vmul.f32 %v669, 1.442695
        %v704 = vpow.pop %v703
        %v705 = vmul.f32 %v670, 1.442695
        %v706 = vpow.pop %v705
        %v707 = vmul.f32 %v671, 1.442695
        %v708 = vpow.pop %v707
        %v709 = vmul.f32 %v672, 1.442695
        %v710 = vpow.pop %v709
        %v711 = vmul.f32 %v673, 1.442695
        %v712 = vpow.pop %v711
        %v713 = vmul.f32 %v674, 1.442695
        %v714 = vpow.pop %v713
        %v715 = vmul.f32 %v675, 1.442695
        %v716 = vpow.pop %v715
        %v717 = vmul.f32 %v676, 1.442695
        %v718 = vpow.pop %v717
        %v719 = vmul.f32 %v677, 1.442695
        %v720 = vpow.pop %v719
        %v721 = vmul.f32 %v678, 1.442695
        %v722 = vpow.pop %v721
        %v723 = vmul.f32 %v679, 1.442695
        %v724 = vpow.pop %v723
        %v725 = vmul.f32 %v680, 1.442695
        %v726 = vpow.pop %v725
        %v727 = vmul.f32 %v681, 1.442695
        %v728 = vpow.pop %v727
        %v729 = vmul.f32 %v682, 1.442695
        %v730 = vpow.pop %v729
        %v731 = vmul.f32 %v683, 1.442695
        %v732 = vpow.pop %v731
        %v733 = vmul.f32 %v684, 1.442695
        %v734 = vpow.pop %v733
        %v735 = vmul.f32 %v685, 1.442695
        %v736 = vpow.pop %v735
        %v737 = vmul.f32 %v686, 1.442695
        %v738 = vpow.pop %v737
        %v739 = vmul.f32 %v687, 1.442695
        %v740 = vpow.pop %v739
        %v741 = vmul.f32 %v688, 1.442695
        %v742 = vpow.pop %v741
        %v743 = vmul.f32 %v689, 1.442695
        %v744 = vpow.pop %v743
        %v745 = vmul.f32 %v690, 1.442695
        %v746 = vpow.pop %v745
        %v747 = vmul.f32 %v691, 1.442695
        %v748 = vpow.pop %v747
        %v749 = vmul.f32 %v692, 1.442695
        %v750 = vpow.pop %v749
        %v751 = vmul.f32 %v693, 1.442695
        %v752 = vpow.pop %v751
        %v753 = vmul.f32 %v694, 1.442695
        %v754 = vpow.pop %v753
        %v755 = vmul.f32 %v695, 1.442695
        %v756 = vpow.pop %v755
        %v757 = vmul.f32 %v696, 1.442695
        %v758 = vpow.pop %v757
        %v759 = vmul.f32 %v697, 1.442695
        %v760 = vpow.pop %v759
        %v761 = vmul.f32 %v698, 1.442695
        %v762 = vpow.pop %v761
        %v763 = vld [vmem:[#allocation6] sm:$0x3]
        %v764 = vsub.f32 %v594, %v655
        %v765 = vmul.f32 %v764, 1.442695
        %v766 = vpow.pop %v765
        %v767 = vmul.f32 %v763, %v766
        %v768 = vadd.f32 %v700, %v704
        %v769 = vadd.f32 %v768, %v708
        %v770 = vadd.f32 %v769, %v712
        %v771 = vadd.f32 %v770, %v716
        %v772 = vadd.f32 %v771, %v720
        %v773 = vadd.f32 %v772, %v724
        %v774 = vadd.f32 %v773, %v728
        %v775 = vadd.f32 %v774, %v732
        %v776 = vadd.f32 %v775, %v736
        %v777 = vadd.f32 %v776, %v740
        %v778 = vadd.f32 %v777, %v744
        %v779 = vadd.f32 %v778, %v748
        %v780 = vadd.f32 %v779, %v752
        %v781 = vadd.f32 %v780, %v756
        %v782 = vadd.f32 %v781, %v760
        %v783 = vrot.slane %v782, 4
        %v784 = vadd.f32 %v782, %v783
        %v785 = vrot.slane %v784, 2
        %v786 = vadd.f32 %v784, %v785
        %v787 = vrot.slane %v786, 1
        %v788 = vadd.f32 %v786, %v787
        %v789 = vadd.f32 %v702, %v706
        %v790 = vadd.f32 %v789, %v710
        %v791 = vadd.f32 %v790, %v714
        %v792 = vadd.f32 %v791, %v718
        %v793 = vadd.f32 %v792, %v722
        %v794 = vadd.f32 %v793, %v726
        %v795 = vadd.f32 %v794, %v730
        %v796 = vadd.f32 %v795, %v734
        %v797 = vadd.f32 %v796, %v738
        %v798 = vadd.f32 %v797, %v742
        %v799 = vadd.f32 %v798, %v746
        %v800 = vadd.f32 %v799, %v750
        %v801 = vadd.f32 %v800, %v754
        %v802 = vadd.f32 %v801, %v758
        %v803 = vadd.f32 %v802, %v762
        %v804 = vrot.slane %v803, 4
        %v805 = vadd.f32 %v803, %v804
        %v806 = vrot.slane %v805, 2
        %v807 = vadd.f32 %v805, %v806
        %v808 = vrot.slane %v807, 1
        %v809 = vadd.f32 %v807, %v808
        %v812 = vcombine.low %v788, %v809
        %v814 = vunpack.c.l.s4 1966171168
        %v815 = vunpack.c.0.s8 %v814
        %v816 = vlaneseq
        %v817 = vshrl.u32 %v816, 7
        %v818 = vsub.s32 %v815, %v817
        %v819 = vrot.slane %v812, %v818
        %v821 = vunpack.c.l.s4 1966171168
        %v822 = vunpack.c.0.s8 %v821
        %v823 = vlaneseq
        %v824 = vshrl.u32 %v823, 7
        %v825 = vsub.s32 %v822, %v824
        %v826 = vrot.slane %v819, %v825
        %v828 = vadd.f32 %v767, %v826
        %829 = vst.msk [vmem:[#allocation6] sm:$0x3] %vm405, %v828
        %830 = vst.msk [vmem:[#allocation5] sm:$0x3] %vm405, %v655
        %v831 = vpack.c.bf16 %v704, %v700
        %v832 = vpack.c.bf16 %v706, %v702
        %v833 = vpack.c.bf16 %v712, %v708
        %v834 = vpack.c.bf16 %v714, %v710
        %v835 = vpack.c.bf16 %v720, %v716
        %v836 = vpack.c.bf16 %v722, %v718
        %v837 = vpack.c.bf16 %v728, %v724
        %v838 = vpack.c.bf16 %v730, %v726
        %v839 = vpack.c.bf16 %v736, %v732
        %v840 = vpack.c.bf16 %v738, %v734
        %v841 = vpack.c.bf16 %v744, %v740
        %v842 = vpack.c.bf16 %v746, %v742
        %v843 = vpack.c.bf16 %v752, %v748
        %v844 = vpack.c.bf16 %v754, %v750
        %v845 = vpack.c.bf16 %v760, %v756
        %v846 = vpack.c.bf16 %v762, %v758
        %847 = vst [vmem:[#allocation7] sm:$0xff] %v831
        %848 = vst [vmem:[#allocation7 + $0x8] sm:$0xff] %v832
        %849 = vst [vmem:[#allocation7 + $0x10] sm:$0xff] %v833
        %850 = vst [vmem:[#allocation7 + $0x18] sm:$0xff] %v834
        %851 = vst [vmem:[#allocation7 + $0x20] sm:$0xff] %v835
        %852 = vst [vmem:[#allocation7 + $0x28] sm:$0xff] %v836
        %853 = vst [vmem:[#allocation7 + $0x30] sm:$0xff] %v837
        %854 = vst [vmem:[#allocation7 + $0x38] sm:$0xff] %v838
        %855 = vst [vmem:[#allocation7 + $0x40] sm:$0xff] %v839
        %856 = vst [vmem:[#allocation7 + $0x48] sm:$0xff] %v840
        %857 = vst [vmem:[#allocation7 + $0x50] sm:$0xff] %v841
        %858 = vst [vmem:[#allocation7 + $0x58] sm:$0xff] %v842
        %859 = vst [vmem:[#allocation7 + $0x60] sm:$0xff] %v843
        %860 = vst [vmem:[#allocation7 + $0x68] sm:$0xff] %v844
        %861 = vst [vmem:[#allocation7 + $0x70] sm:$0xff] %v845
        %862 = vst [vmem:[#allocation7 + $0x78] sm:$0xff] %v846
        %863 = vst.msk [vmem:[#allocation8] sm:$0x3] %vm405, %v655
        %v864 = vld [vmem:[%s396] sm:$0x1]
        %v865 = vld [vmem:[#allocation4] sm:$0x3]
        %866 = vxpose.xlu0.c.b16.start [1/8] %v864, 128
        %867 = vxpose.xlu0.c.b16.cont [2/8] 0, 128
        %868 = vxpose.xlu0.c.b16.cont [3/8] 0, 128
        %869 = vxpose.xlu0.c.b16.cont [4/8] 0, 128
        %870 = vxpose.xlu0.c.b16.cont [5/8] 0, 128
        %871 = vxpose.xlu0.c.b16.cont [6/8] 0, 128
        %872 = vxpose.xlu0.c.b16.cont [7/8] 0, 128
        %873 = vxpose.xlu0.c.b16.end [8/8] 0, 128
        %v874 = vpop.trf.xlu0
        %v875 = vpop.trf.xlu0
        %v876 = vpop.trf.xlu0
        %v877 = vpop.trf.xlu0
        %v878 = vpop.trf.xlu0
        %v879 = vpop.trf.xlu0
        %v880 = vpop.trf.xlu0
        %v881 = vpop.trf.xlu0
        %v884 = vunpack.c.l.s4 1966171168
        %v885 = vunpack.c.0.s8 %v884
        %v886 = vlaneseq
        %v887 = vshrl.u32 %v886, 7
        %v888 = vsub.s32 %v885, %v887
        %v889 = vrot.slane %v865, %v888
        %v890 = vcombine.high %v889, %v889
        %v892 = vunpack.c.l.s4 1966171168
        %v893 = vunpack.c.0.s8 %v892
        %v894 = vlaneseq
        %v895 = vshrl.u32 %v894, 7
        %v896 = vsub.s32 %v893, %v895
        %v897 = vrot.slane %v889, %v896
        %v899 = vunpack.c.l.s4 1966171168
        %v900 = vunpack.c.0.s8 %v899
        %v901 = vlaneseq
        %v902 = vshrl.u32 %v901, 7
        %v903 = vsub.s32 %v900, %v902
        %v904 = vrot.slane %v890, %v903
        %v906 = vsel %vm449, %v874, 0
        %v909 = vsel %vm449, %v875, 0
        %v912 = vsel %vm449, %v876, 0
        %v915 = vsel %vm449, %v877, 0
        %v918 = vsel %vm449, %v878, 0
        %v921 = vsel %vm449, %v879, 0
        %v924 = vsel %vm449, %v880, 0
        %v927 = vsel %vm449, %v881, 0
        %v930 = vsel %vm474, %v897, 0
        %v933 = vsel %vm474, %v904, 0
        %935 = vmatprep.subr.bf16.mxu0 %v933
        %936 = vmatpush1.bf16.msra.mxu0 %v930
        %937 = vmatprep.subr.bf16.mxu0 0
        %938 = vmatpush1.bf16.msra.mxu0 0
        %939 = vmatprep.subr.bf16.mxu0 0
        %940 = vmatpush1.bf16.msra.mxu0 0
        %941 = vmatprep.subr.bf16.mxu0 0
        %942 = vmatpush1.bf16.msra.mxu0 0
        %943 = vmatprep.subr.bf16.mxu0 0
        %944 = vmatpush1.bf16.msra.mxu0 0
        %945 = vmatprep.subr.bf16.mxu0 0
        %946 = vmatpush1.bf16.msra.mxu0 0
        %947 = vmatprep.subr.bf16.mxu0 0
        %948 = vmatpush1.bf16.msra.mxu0 0
        %949 = vmatprep.subr.bf16.mxu0 0
        %950 = vmatpush1.bf16.msra.mxu0 0
        %951 = vmatprep.subr.bf16.mxu0 0
        %952 = vmatpush1.bf16.msra.mxu0 0
        %953 = vmatprep.subr.bf16.mxu0 0
        %954 = vmatpush1.bf16.msra.mxu0 0
        %955 = vmatprep.subr.bf16.mxu0 0
        %956 = vmatpush1.bf16.msra.mxu0 0
        %957 = vmatprep.subr.bf16.mxu0 0
        %958 = vmatpush1.bf16.msra.mxu0 0
        %959 = vmatprep.subr.bf16.mxu0 0
        %960 = vmatpush1.bf16.msra.mxu0 0
        %961 = vmatprep.subr.bf16.mxu0 0
        %962 = vmatpush1.bf16.msra.mxu0 0
        %963 = vmatprep.subr.bf16.mxu0 0
        %964 = vmatpush1.bf16.msra.mxu0 0
        %965 = vmatprep.subr.bf16.mxu0 0
        %966 = vmatpush1.bf16.msra.mxu0 0
        %967 = vmatprep.mubr.bf16.mxu0 0
        %968 = vmatmul.mubr.bf16.gmra.mrb[0].mxu0 %v906
        %v969 = vpop.f32.mrb[0].mxu0
        %v970 = vadd.f32 0.0, %v969
        %v971 = vpop.f32.mrb[0].mxu0
        %v972 = vadd.f32 0.0, %v971
        %v973 = vpop.f32.mrb[0].mxu0
        %v974 = vadd.f32 0.0, %v973
        %v975 = vpop.f32.mrb[0].mxu0
        %v976 = vadd.f32 0.0, %v975
        %977 = vmatprep.mubr.bf16.mxu0 0
        %978 = vmatmul.mubr.bf16.gmra.mrb[0].mxu0 %v909
        %v979 = vpop.f32.mrb[0].mxu0
        %v980 = vadd.f32 0.0, %v979
        %v981 = vpop.f32.mrb[0].mxu0
        %v982 = vadd.f32 0.0, %v981
        %v983 = vpop.f32.mrb[0].mxu0
        %v984 = vadd.f32 0.0, %v983
        %v985 = vpop.f32.mrb[0].mxu0
        %v986 = vadd.f32 0.0, %v985
        %987 = vmatprep.mubr.bf16.mxu0 0
        %988 = vmatmul.mubr.bf16.gmra.mrb[0].mxu0 %v912
        %v989 = vpop.f32.mrb[0].mxu0
        %v990 = vadd.f32 0.0, %v989
        %v991 = vpop.f32.mrb[0].mxu0
        %v992 = vadd.f32 0.0, %v991
        %v993 = vpop.f32.mrb[0].mxu0
        %v994 = vadd.f32 0.0, %v993
        %v995 = vpop.f32.mrb[0].mxu0
        %v996 = vadd.f32 0.0, %v995
        %997 = vmatprep.mubr.bf16.mxu0 0
        %998 = vmatmul.mubr.bf16.gmra.mrb[0].mxu0 %v915
        %v999 = vpop.f32.mrb[0].mxu0
        %v1000 = vadd.f32 0.0, %v999
        %v1001 = vpop.f32.mrb[0].mxu0
        %v1002 = vadd.f32 0.0, %v1001
        %v1003 = vpop.f32.mrb[0].mxu0
        %v1004 = vadd.f32 0.0, %v1003
        %v1005 = vpop.f32.mrb[0].mxu0
        %v1006 = vadd.f32 0.0, %v1005
        %1007 = vmatprep.mubr.bf16.mxu0 0
        %1008 = vmatmul.mubr.bf16.gmra.mrb[0].mxu0 %v918
        %v1009 = vpop.f32.mrb[0].mxu0
        %v1010 = vadd.f32 0.0, %v1009
        %v1011 = vpop.f32.mrb[0].mxu0
        %v1012 = vadd.f32 0.0, %v1011
        %v1013 = vpop.f32.mrb[0].mxu0
        %v1014 = vadd.f32 0.0, %v1013
        %v1015 = vpop.f32.mrb[0].mxu0
        %v1016 = vadd.f32 0.0, %v1015
        %1017 = vmatprep.mubr.bf16.mxu0 0
        %1018 = vmatmul.mubr.bf16.gmra.mrb[0].mxu0 %v921
        %v1019 = vpop.f32.mrb[0].mxu0
        %v1020 = vadd.f32 0.0, %v1019
        %v1021 = vpop.f32.mrb[0].mxu0
        %v1022 = vadd.f32 0.0, %v1021
        %v1023 = vpop.f32.mrb[0].mxu0
        %v1024 = vadd.f32 0.0, %v1023
        %v1025 = vpop.f32.mrb[0].mxu0
        %v1026 = vadd.f32 0.0, %v1025
        %1027 = vmatprep.mubr.bf16.mxu0 0
        %1028 = vmatmul.mubr.bf16.gmra.mrb[0].mxu0 %v924
        %v1029 = vpop.f32.mrb[0].mxu0
        %v1030 = vadd.f32 0.0, %v1029
        %v1031 = vpop.f32.mrb[0].mxu0
        %v1032 = vadd.f32 0.0, %v1031
        %v1033 = vpop.f32.mrb[0].mxu0
        %v1034 = vadd.f32 0.0, %v1033
        %v1035 = vpop.f32.mrb[0].mxu0
        %v1036 = vadd.f32 0.0, %v1035
        %1037 = vmatprep.mubr.bf16.mxu0 0
        %1038 = vmatmul.mubr.bf16.gmra.mrb[0].mxu0 %v927
        %v1039 = vpop.f32.mrb[0].mxu0
        %v1040 = vadd.f32 0.0, %v1039
        %v1041 = vpop.f32.mrb[0].mxu0
        %v1042 = vadd.f32 0.0, %v1041
        %v1043 = vpop.f32.mrb[0].mxu0
        %v1044 = vadd.f32 0.0, %v1043
        %v1045 = vpop.f32.mrb[0].mxu0
        %v1046 = vadd.f32 0.0, %v1045
        %1047 = vdwg.mxu0
        %v1048 = vld [vmem:[#allocation5] sm:$0x3]
        %v1049 = vmax.f32 %v970, %v980
        %v1050 = vmax.f32 %v974, %v984
        %v1051 = vmax.f32 %v1049, %v990
        %v1052 = vmax.f32 %v1050, %v994
        %v1053 = vmax.f32 %v1051, %v1000
        %v1054 = vmax.f32 %v1052, %v1004
        %v1055 = vmax.f32 %v1053, %v1010
        %v1056 = vmax.f32 %v1054, %v1014
        %v1057 = vmax.f32 %v1055, %v1020
        %v1058 = vmax.f32 %v1056, %v1024
        %v1059 = vmax.f32 %v1057, %v1030
        %v1060 = vmax.f32 %v1058, %v1034
        %v1061 = vmax.f32 %v1059, %v1040
        %v1062 = vmax.f32 %v1060, %v1044
        %v1063 = vmax.f32 %v1061, %v1062
        %v1064 = vrot.slane %v1063, 4
        %v1065 = vmax.f32 %v1063, %v1064
        %v1066 = vrot.slane %v1065, 2
        %v1067 = vmax.f32 %v1065, %v1066
        %v1068 = vrot.slane %v1067, 1
        %v1069 = vmax.f32 %v1067, %v1068
        %v1070 = vmax.f32 %v972, %v982
        %v1071 = vmax.f32 %v976, %v986
        %v1072 = vmax.f32 %v1070, %v992
        %v1073 = vmax.f32 %v1071, %v996
        %v1074 = vmax.f32 %v1072, %v1002
        %v1075 = vmax.f32 %v1073, %v1006
        %v1076 = vmax.f32 %v1074, %v1012
        %v1077 = vmax.f32 %v1075, %v1016
        %v1078 = vmax.f32 %v1076, %v1022
        %v1079 = vmax.f32 %v1077, %v1026
        %v1080 = vmax.f32 %v1078, %v1032
        %v1081 = vmax.f32 %v1079, %v1036
        %v1082 = vmax.f32 %v1080, %v1042
        %v1083 = vmax.f32 %v1081, %v1046
        %v1084 = vmax.f32 %v1082, %v1083
        %v1085 = vrot.slane %v1084, 4
        %v1086 = vmax.f32 %v1084, %v1085
        %v1087 = vrot.slane %v1086, 2
        %v1088 = vmax.f32 %v1086, %v1087
        %v1089 = vrot.slane %v1088, 1
        %v1090 = vmax.f32 %v1088, %v1089
        %v1093 = vcombine.low %v1069, %v1090
        %v1095 = vunpack.c.l.s4 1966171168
        %v1096 = vunpack.c.0.s8 %v1095
        %v1097 = vlaneseq
        %v1098 = vshrl.u32 %v1097, 7
        %v1099 = vsub.s32 %v1096, %v1098
        %v1100 = vrot.slane %v1093, %v1099
        %v1102 = vunpack.c.l.s4 1966171168
        %v1103 = vunpack.c.0.s8 %v1102
        %v1104 = vlaneseq
        %v1105 = vshrl.u32 %v1104, 7
        %v1106 = vsub.s32 %v1103, %v1105
        %v1107 = vrot.slane %v1100, %v1106
        %v1109 = vmax.f32 %v1048, %v1107
        %v1111 = vlaneseq
        %v1112 = vshrl.u32 %v1111, 7
        %v1113 = vsub.s32 0, %v1112
        %v1114 = vrot.slane %v1109, %v1113
        %v1115 = vlaneseq
        %v1116 = vshrl.u32 %v1115, 7
        %v1117 = vsub.s32 1, %v1116
        %v1118 = vrot.slane %v1109, %v1117
        %v1121 = vsub.f32 %v970, %v1114
        %v1122 = vsub.f32 %v972, %v1118
        %v1123 = vsub.f32 %v974, %v1114
        %v1124 = vsub.f32 %v976, %v1118
        %v1125 = vsub.f32 %v980, %v1114
        %v1126 = vsub.f32 %v982, %v1118
        %v1127 = vsub.f32 %v984, %v1114
        %v1128 = vsub.f32 %v986, %v1118
        %v1129 = vsub.f32 %v990, %v1114
        %v1130 = vsub.f32 %v992, %v1118
        %v1131 = vsub.f32 %v994, %v1114
        %v1132 = vsub.f32 %v996, %v1118
        %v1133 = vsub.f32 %v1000, %v1114
        %v1134 = vsub.f32 %v1002, %v1118
        %v1135 = vsub.f32 %v1004, %v1114
        %v1136 = vsub.f32 %v1006, %v1118
        %v1137 = vsub.f32 %v1010, %v1114
        %v1138 = vsub.f32 %v1012, %v1118
        %v1139 = vsub.f32 %v1014, %v1114
        %v1140 = vsub.f32 %v1016, %v1118
        %v1141 = vsub.f32 %v1020, %v1114
        %v1142 = vsub.f32 %v1022, %v1118
        %v1143 = vsub.f32 %v1024, %v1114
        %v1144 = vsub.f32 %v1026, %v1118
        %v1145 = vsub.f32 %v1030, %v1114
        %v1146 = vsub.f32 %v1032, %v1118
        %v1147 = vsub.f32 %v1034, %v1114
        %v1148 = vsub.f32 %v1036, %v1118
        %v1149 = vsub.f32 %v1040, %v1114
        %v1150 = vsub.f32 %v1042, %v1118
        %v1151 = vsub.f32 %v1044, %v1114
        %v1152 = vsub.f32 %v1046, %v1118
        %v1153 = vmul.f32 %v1121, 1.442695
        %v1154 = vpow.pop %v1153
        %v1155 = vmul.f32 %v1122, 1.442695
        %v1156 = vpow.pop %v1155
        %v1157 = vmul.f32 %v1123, 1.442695
        %v1158 = vpow.pop %v1157
        %v1159 = vmul.f32 %v1124, 1.442695
        %v1160 = vpow.pop %v1159
        %v1161 = vmul.f32 %v1125, 1.442695
        %v1162 = vpow.pop %v1161
        %v1163 = vmul.f32 %v1126, 1.442695
        %v1164 = vpow.pop %v1163
        %v1165 = vmul.f32 %v1127, 1.442695
        %v1166 = vpow.pop %v1165
        %v1167 = vmul.f32 %v1128, 1.442695
        %v1168 = vpow.pop %v1167
        %v1169 = vmul.f32 %v1129, 1.442695
        %v1170 = vpow.pop %v1169
        %v1171 = vmul.f32 %v1130, 1.442695
        %v1172 = vpow.pop %v1171
        %v1173 = vmul.f32 %v1131, 1.442695
        %v1174 = vpow.pop %v1173
        %v1175 = vmul.f32 %v1132, 1.442695
        %v1176 = vpow.pop %v1175
        %v1177 = vmul.f32 %v1133, 1.442695
        %v1178 = vpow.pop %v1177
        %v1179 = vmul.f32 %v1134, 1.442695
        %v1180 = vpow.pop %v1179
        %v1181 = vmul.f32 %v1135, 1.442695
        %v1182 = vpow.pop %v1181
        %v1183 = vmul.f32 %v1136, 1.442695
        %v1184 = vpow.pop %v1183
        %v1185 = vmul.f32 %v1137, 1.442695
        %v1186 = vpow.pop %v1185
        %v1187 = vmul.f32 %v1138, 1.442695
        %v1188 = vpow.pop %v1187
        %v1189 = vmul.f32 %v1139, 1.442695
        %v1190 = vpow.pop %v1189
        %v1191 = vmul.f32 %v1140, 1.442695
        %v1192 = vpow.pop %v1191
        %v1193 = vmul.f32 %v1141, 1.442695
        %v1194 = vpow.pop %v1193
        %v1195 = vmul.f32 %v1142, 1.442695
        %v1196 = vpow.pop %v1195
        %v1197 = vmul.f32 %v1143, 1.442695
        %v1198 = vpow.pop %v1197
        %v1199 = vmul.f32 %v1144, 1.442695
        %v1200 = vpow.pop %v1199
        %v1201 = vmul.f32 %v1145, 1.442695
        %v1202 = vpow.pop %v1201
        %v1203 = vmul.f32 %v1146, 1.442695
        %v1204 = vpow.pop %v1203
        %v1205 = vmul.f32 %v1147, 1.442695
        %v1206 = vpow.pop %v1205
        %v1207 = vmul.f32 %v1148, 1.442695
        %v1208 = vpow.pop %v1207
        %v1209 = vmul.f32 %v1149, 1.442695
        %v1210 = vpow.pop %v1209
        %v1211 = vmul.f32 %v1150, 1.442695
        %v1212 = vpow.pop %v1211
        %v1213 = vmul.f32 %v1151, 1.442695
        %v1214 = vpow.pop %v1213
        %v1215 = vmul.f32 %v1152, 1.442695
        %v1216 = vpow.pop %v1215
        %v1217 = vld [vmem:[#allocation6] sm:$0x3]
        %v1218 = vsub.f32 %v1048, %v1109
        %v1219 = vmul.f32 %v1218, 1.442695
        %v1220 = vpow.pop %v1219
        %v1221 = vmul.f32 %v1217, %v1220
        %v1222 = vadd.f32 %v1154, %v1158
        %v1223 = vadd.f32 %v1222, %v1162
        %v1224 = vadd.f32 %v1223, %v1166
        %v1225 = vadd.f32 %v1224, %v1170
        %v1226 = vadd.f32 %v1225, %v1174
        %v1227 = vadd.f32 %v1226, %v1178
        %v1228 = vadd.f32 %v1227, %v1182
        %v1229 = vadd.f32 %v1228, %v1186
        %v1230 = vadd.f32 %v1229, %v1190
        %v1231 = vadd.f32 %v1230, %v1194
        %v1232 = vadd.f32 %v1231, %v1198
        %v1233 = vadd.f32 %v1232, %v1202
        %v1234 = vadd.f32 %v1233, %v1206
        %v1235 = vadd.f32 %v1234, %v1210
        %v1236 = vadd.f32 %v1235, %v1214
        %v1237 = vrot.slane %v1236, 4
        %v1238 = vadd.f32 %v1236, %v1237
        %v1239 = vrot.slane %v1238, 2
        %v1240 = vadd.f32 %v1238, %v1239
        %v1241 = vrot.slane %v1240, 1
        %v1242 = vadd.f32 %v1240, %v1241
        %v1243 = vadd.f32 %v1156, %v1160
        %v1244 = vadd.f32 %v1243, %v1164
        %v1245 = vadd.f32 %v1244, %v1168
        %v1246 = vadd.f32 %v1245, %v1172
        %v1247 = vadd.f32 %v1246, %v1176
        %v1248 = vadd.f32 %v1247, %v1180
        %v1249 = vadd.f32 %v1248, %v1184
        %v1250 = vadd.f32 %v1249, %v1188
        %v1251 = vadd.f32 %v1250, %v1192
        %v1252 = vadd.f32 %v1251, %v1196
        %v1253 = vadd.f32 %v1252, %v1200
        %v1254 = vadd.f32 %v1253, %v1204
        %v1255 = vadd.f32 %v1254, %v1208
        %v1256 = vadd.f32 %v1255, %v1212
        %v1257 = vadd.f32 %v1256, %v1216
        %v1258 = vrot.slane %v1257, 4
        %v1259 = vadd.f32 %v1257, %v1258
        %v1260 = vrot.slane %v1259, 2
        %v1261 = vadd.f32 %v1259, %v1260
        %v1262 = vrot.slane %v1261, 1
        %v1263 = vadd.f32 %v1261, %v1262
        %v1266 = vcombine.low %v1242, %v1263
        %v1268 = vunpack.c.l.s4 1966171168
        %v1269 = vunpack.c.0.s8 %v1268
        %v1270 = vlaneseq
        %v1271 = vshrl.u32 %v1270, 7
        %v1272 = vsub.s32 %v1269, %v1271
        %v1273 = vrot.slane %v1266, %v1272
        %v1275 = vunpack.c.l.s4 1966171168
        %v1276 = vunpack.c.0.s8 %v1275
        %v1277 = vlaneseq
        %v1278 = vshrl.u32 %v1277, 7
        %v1279 = vsub.s32 %v1276, %v1278
        %v1280 = vrot.slane %v1273, %v1279
        %v1282 = vadd.f32 %v1221, %v1280
        %1283 = vst.msk [vmem:[#allocation6] sm:$0x3] %vm405, %v1282
        %1284 = vst.msk [vmem:[#allocation5] sm:$0x3] %vm405, %v1109
        %v1285 = vpack.c.bf16 %v1158, %v1154
        %v1286 = vpack.c.bf16 %v1160, %v1156
        %v1287 = vpack.c.bf16 %v1166, %v1162
        %v1288 = vpack.c.bf16 %v1168, %v1164
        %v1289 = vpack.c.bf16 %v1174, %v1170
        %v1290 = vpack.c.bf16 %v1176, %v1172
        %v1291 = vpack.c.bf16 %v1182, %v1178
        %v1292 = vpack.c.bf16 %v1184, %v1180
        %v1293 = vpack.c.bf16 %v1190, %v1186
        %v1294 = vpack.c.bf16 %v1192, %v1188
        %v1295 = vpack.c.bf16 %v1198, %v1194
        %v1296 = vpack.c.bf16 %v1200, %v1196
        %v1297 = vpack.c.bf16 %v1206, %v1202
        %v1298 = vpack.c.bf16 %v1208, %v1204
        %v1299 = vpack.c.bf16 %v1214, %v1210
        %v1300 = vpack.c.bf16 %v1216, %v1212
        %s1301 = scalar_lea.vmem [#allocation7], 128
        %1302 = vst [vmem:[%s1301] sm:$0xff] %v1285
        %1303 = vst [vmem:[%s1301 + $0x8] sm:$0xff] %v1286
        %1304 = vst [vmem:[%s1301 + $0x10] sm:$0xff] %v1287
        %1305 = vst [vmem:[%s1301 + $0x18] sm:$0xff] %v1288
        %1306 = vst [vmem:[%s1301 + $0x20] sm:$0xff] %v1289
        %1307 = vst [vmem:[%s1301 + $0x28] sm:$0xff] %v1290
        %1308 = vst [vmem:[%s1301 + $0x30] sm:$0xff] %v1291
        %1309 = vst [vmem:[%s1301 + $0x38] sm:$0xff] %v1292
        %1310 = vst [vmem:[%s1301 + $0x40] sm:$0xff] %v1293
        %1311 = vst [vmem:[%s1301 + $0x48] sm:$0xff] %v1294
        %1312 = vst [vmem:[%s1301 + $0x50] sm:$0xff] %v1295
        %1313 = vst [vmem:[%s1301 + $0x58] sm:$0xff] %v1296
        %1314 = vst [vmem:[%s1301 + $0x60] sm:$0xff] %v1297
        %1315 = vst [vmem:[%s1301 + $0x68] sm:$0xff] %v1298
        %1316 = vst [vmem:[%s1301 + $0x70] sm:$0xff] %v1299
        %1317 = vst [vmem:[%s1301 + $0x78] sm:$0xff] %v1300
        %s1318 = scalar_lea.vmem [#allocation8], 2
        %1319 = vst.msk [vmem:[%s1318] sm:$0x3] %vm405, %v1109
        %v1320 = vld [vmem:[#allocation6] sm:$0x3]
        %v1321 = vrcp.pop %v1320
        %v1322 = vld [vmem:[#allocation2] sm:$0x3]
        %v1323 = vunpack.c.l.bf16 %v1322
        %v1325 = vlaneseq
        %v1326 = vshrl.u32 %v1325, 7
        %v1327 = vsub.s32 0, %v1326
        %v1328 = vrot.slane %v1321, %v1327
        %v1329 = vlaneseq
        %v1330 = vshrl.u32 %v1329, 7
        %v1331 = vsub.s32 1, %v1330
        %v1332 = vrot.slane %v1321, %v1331
        %v1333 = vcombine.low %v1328, %v1332
        %v1335 = vunpack.c.l.s4 1983009808
        %v1336 = vunpack.c.0.s8 %v1335
        %v1337 = vlaneseq
        %v1338 = vshrl.u32 %v1337, 7
        %v1339 = vsub.s32 %v1336, %v1338
        %v1340 = vrot.slane %v1333, %v1339
        %v1342 = vmul.f32 %v1323, %v1340
        %v1345 = vunpack.c.l.s4 1983009808
        %v1346 = vunpack.c.0.s8 %v1345
        %v1347 = vlaneseq
        %v1348 = vshrl.u32 %v1347, 7
        %v1349 = vsub.s32 %v1346, %v1348
        %v1350 = vrot.slane %v1342, %v1349
        %v1351 = vcombine.high %v1350, %v1350
        %v1354 = vpack.c.bf16 %v1350, %v1350
        %v1355 = vpack.c.bf16 %v1351, %v1351
        %v1358 = vcombine.low %v1354, %v1355
        %v1360 = vunpack.c.l.s4 1966171168
        %v1361 = vunpack.c.0.s8 %v1360
        %v1362 = vlaneseq
        %v1363 = vshrl.u32 %v1362, 7
        %v1364 = vsub.s32 %v1361, %v1363
        %v1365 = vrot.slane %v1358, %v1364
        %v1367 = vunpack.c.l.s4 1966171168
        %v1368 = vunpack.c.0.s8 %v1367
        %v1369 = vlaneseq
        %v1370 = vshrl.u32 %v1369, 7
        %v1371 = vsub.s32 %v1368, %v1370
        %v1372 = vrot.slane %v1365, %v1371
        %1374 = vst [vmem:[#allocation2] sm:$0x3] %v1372
        %v1375 = vld [vmem:[#allocation8] sm:$0x3]
        %v1376 = vld [vmem:[#allocation5] sm:$0x3]
        %v1377 = vsub.f32 %v1375, %v1376
        %v1378 = vmul.f32 %v1377, 1.442695
        %v1379 = vpow.pop %v1378
        %v1380 = vld [vmem:[#allocation7] sm:$0xff]
        %v1381 = vld [vmem:[#allocation7 + $0x8] sm:$0xff]
        %v1382 = vld [vmem:[#allocation7 + $0x10] sm:$0xff]
        %v1383 = vld [vmem:[#allocation7 + $0x18] sm:$0xff]
        %v1384 = vld [vmem:[#allocation7 + $0x20] sm:$0xff]
        %v1385 = vld [vmem:[#allocation7 + $0x28] sm:$0xff]
        %v1386 = vld [vmem:[#allocation7 + $0x30] sm:$0xff]
        %v1387 = vld [vmem:[#allocation7 + $0x38] sm:$0xff]
        %v1388 = vld [vmem:[#allocation7 + $0x40] sm:$0xff]
        %v1389 = vld [vmem:[#allocation7 + $0x48] sm:$0xff]
        %v1390 = vld [vmem:[#allocation7 + $0x50] sm:$0xff]
        %v1391 = vld [vmem:[#allocation7 + $0x58] sm:$0xff]
        %v1392 = vld [vmem:[#allocation7 + $0x60] sm:$0xff]
        %v1393 = vld [vmem:[#allocation7 + $0x68] sm:$0xff]
        %v1394 = vld [vmem:[#allocation7 + $0x70] sm:$0xff]
        %v1395 = vld [vmem:[#allocation7 + $0x78] sm:$0xff]
        %v1397 = vlaneseq
        %v1398 = vshrl.u32 %v1397, 7
        %v1399 = vsub.s32 0, %v1398
        %v1400 = vrot.slane %v1379, %v1399
        %v1401 = vlaneseq
        %v1402 = vshrl.u32 %v1401, 7
        %v1403 = vsub.s32 1, %v1402
        %v1404 = vrot.slane %v1379, %v1403
        %v1407 = vpack.c.bf16 %v1400, %v1400
        %v1408 = vpack.c.bf16 %v1404, %v1404
        %v1410 = vpack.i.b16 %v1407, %v1407
        %v1412 = vlaneseq
        %v1413 = vshrl.u32 %v1412, 7
        %v1414 = vsub.s32 0, %v1413
        %v1415 = vrot.slane %v1410, %v1414
        %v1417 = vpack.i.b16 %v1408, %v1408
        %v1419 = vlaneseq
        %v1420 = vshrl.u32 %v1419, 7
        %v1421 = vsub.s32 0, %v1420
        %v1422 = vrot.slane %v1417, %v1421
        %v1423 = vmul.bf16 %v1380, %v1415
        %v1424 = vmul.bf16 %v1381, %v1422
        %v1425 = vmul.bf16 %v1382, %v1415
        %v1426 = vmul.bf16 %v1383, %v1422
        %v1427 = vmul.bf16 %v1384, %v1415
        %v1428 = vmul.bf16 %v1385, %v1422
        %v1429 = vmul.bf16 %v1386, %v1415
        %v1430 = vmul.bf16 %v1387, %v1422
        %v1431 = vmul.bf16 %v1388, %v1415
        %v1432 = vmul.bf16 %v1389, %v1422
        %v1433 = vmul.bf16 %v1390, %v1415
        %v1434 = vmul.bf16 %v1391, %v1422
        %v1435 = vmul.bf16 %v1392, %v1415
        %v1436 = vmul.bf16 %v1393, %v1422
        %v1437 = vmul.bf16 %v1394, %v1415
        %v1438 = vmul.bf16 %v1395, %v1422
        %v1439 = vld [vmem:[#allocation2] sm:$0x3]
        %v1442 = vunpack.c.l.s4 1966171168
        %v1443 = vunpack.c.0.s8 %v1442
        %v1444 = vlaneseq
        %v1445 = vshrl.u32 %v1444, 7
        %v1446 = vsub.s32 %v1443, %v1445
        %v1447 = vrot.slane %v1439, %v1446
        %v1448 = vcombine.high %v1447, %v1447
        %v1450 = vunpack.c.l.s4 1966171168
        %v1451 = vunpack.c.0.s8 %v1450
        %v1452 = vlaneseq
        %v1453 = vshrl.u32 %v1452, 7
        %v1454 = vsub.s32 %v1451, %v1453
        %v1455 = vrot.slane %v1447, %v1454
        %v1457 = vunpack.c.l.s4 1966171168
        %v1458 = vunpack.c.0.s8 %v1457
        %v1459 = vlaneseq
        %v1460 = vshrl.u32 %v1459, 7
        %v1461 = vsub.s32 %v1458, %v1460
        %v1462 = vrot.slane %v1448, %v1461
        %1465 = vmatprep.subr.bf16.mxu0 %v1424
        %1466 = vmatpush1.bf16.xpose.msra.mxu0 %v1423
        %1467 = vmatprep.subr.bf16.mxu0 %v1426
        %1468 = vmatpush1.bf16.xpose.msra.mxu0 %v1425
        %1469 = vmatprep.subr.bf16.mxu0 %v1428
        %1470 = vmatpush1.bf16.xpose.msra.mxu0 %v1427
        %1471 = vmatprep.subr.bf16.mxu0 %v1430
        %1472 = vmatpush1.bf16.xpose.msra.mxu0 %v1429
        %1473 = vmatprep.subr.bf16.mxu0 %v1432
        %1474 = vmatpush1.bf16.xpose.msra.mxu0 %v1431
        %1475 = vmatprep.subr.bf16.mxu0 %v1434
        %1476 = vmatpush1.bf16.xpose.msra.mxu0 %v1433
        %1477 = vmatprep.subr.bf16.mxu0 %v1436
        %1478 = vmatpush1.bf16.xpose.msra.mxu0 %v1435
        %1479 = vmatprep.subr.bf16.mxu0 %v1438
        %1480 = vmatpush1.bf16.xpose.msra.mxu0 %v1437
        %1481 = vmatprep.subr.bf16.mxu0 0
        %1482 = vmatpush1.bf16.xpose.msra.mxu0 0
        %1483 = vmatprep.subr.bf16.mxu0 0
        %1484 = vmatpush1.bf16.xpose.msra.mxu0 0
        %1485 = vmatprep.subr.bf16.mxu0 0
        %1486 = vmatpush1.bf16.xpose.msra.mxu0 0
        %1487 = vmatprep.subr.bf16.mxu0 0
        %1488 = vmatpush1.bf16.xpose.msra.mxu0 0
        %1489 = vmatprep.subr.bf16.mxu0 0
        %1490 = vmatpush1.bf16.xpose.msra.mxu0 0
        %1491 = vmatprep.subr.bf16.mxu0 0
        %1492 = vmatpush1.bf16.xpose.msra.mxu0 0
        %1493 = vmatprep.subr.bf16.mxu0 0
        %1494 = vmatpush1.bf16.xpose.msra.mxu0 0
        %1495 = vmatprep.subr.bf16.mxu0 0
        %1496 = vmatpush1.bf16.xpose.msra.mxu0 0
        %1497 = vmatprep.mubr.bf16.mxu0 %v1462
        %1498 = vmatmul.mubr.bf16.gmra.mrb[0].mxu0 %v1455
        %v1499 = vpop.f32.mrb[0].mxu0
        %v1500 = vadd.f32 0.0, %v1499
        %v1501 = vpop.f32.mrb[0].mxu0
        %v1502 = vpop.f32.mrb[0].mxu0
        %v1503 = vpop.f32.mrb[0].mxu0
        %1504 = vdwg.mxu0
        %v1505 = vld [vmem:[%s3] sm:$0xf]
        %v1506 = vpack.c.bf16 %v1505, %v1505
        %v1507 = vpack.c.bf16 %v1500, %v1500
        %v1508 = vld [vmem:[%s4] sm:$0xf]
        %1510 = vset.pattern.permute.xlu0 0
        %1511 = vperm.xlu0 %1510, %v1508
        %v1512 = vpop.permute.xlu0 %1511
        %v1515 = vsel %vm449, %v1506, 0
        %v1518 = vsel %vm474, %v1507, 0
        %1520 = vmatprep.subr.bf16.mxu0 0
        %1521 = vmatpush1.bf16.msra.mxu0 %v1518
        %1522 = vmatprep.subr.bf16.mxu0 0
        %1523 = vmatpush1.bf16.msra.mxu0 0
        %1524 = vmatprep.subr.bf16.mxu0 0
        %1525 = vmatpush1.bf16.msra.mxu0 0
        %1526 = vmatprep.subr.bf16.mxu0 0
        %1527 = vmatpush1.bf16.msra.mxu0 0
        %1528 = vmatprep.subr.bf16.mxu0 0
        %1529 = vmatpush1.bf16.msra.mxu0 0
        %1530 = vmatprep.subr.bf16.mxu0 0
        %1531 = vmatpush1.bf16.msra.mxu0 0
        %1532 = vmatprep.subr.bf16.mxu0 0
        %1533 = vmatpush1.bf16.msra.mxu0 0
        %1534 = vmatprep.subr.bf16.mxu0 0
        %1535 = vmatpush1.bf16.msra.mxu0 0
        %1536 = vmatprep.subr.bf16.mxu0 0
        %1537 = vmatpush1.bf16.msra.mxu0 0
        %1538 = vmatprep.subr.bf16.mxu0 0
        %1539 = vmatpush1.bf16.msra.mxu0 0
        %1540 = vmatprep.subr.bf16.mxu0 0
        %1541 = vmatpush1.bf16.msra.mxu0 0
        %1542 = vmatprep.subr.bf16.mxu0 0
        %1543 = vmatpush1.bf16.msra.mxu0 0
        %1544 = vmatprep.subr.bf16.mxu0 0
        %1545 = vmatpush1.bf16.msra.mxu0 0
        %1546 = vmatprep.subr.bf16.mxu0 0
        %1547 = vmatpush1.bf16.msra.mxu0 0
        %1548 = vmatprep.subr.bf16.mxu0 0
        %1549 = vmatpush1.bf16.msra.mxu0 0
        %1550 = vmatprep.subr.bf16.mxu0 0
        %1551 = vmatpush1.bf16.msra.mxu0 0
        %1552 = vmatprep.mubr.bf16.mxu0 0
        %1553 = vmatmul.mubr.bf16.gmra.mrb[0].mxu0 %v1515
        %v1554 = vpop.f32.mrb[0].mxu0
        %v1555 = vadd.f32 %v1512, %v1554
        %v1556 = vpop.f32.mrb[0].mxu0
        %v1557 = vpop.f32.mrb[0].mxu0
        %v1558 = vpop.f32.mrb[0].mxu0
        %1559 = vdwg.mxu0
        %v1560 = vld [vmem:[%s222] sm:$0xf]
        %v1561 = vadd.f32 %v1555, %v1560
        %1562 = vst [vmem:[%s217] sm:$0xf] %v1561
        %v1563 = vld [vmem:[%s1318] sm:$0x3]
        %v1564 = vld [vmem:[#allocation5] sm:$0x3]
        %v1565 = vsub.f32 %v1563, %v1564
        %v1566 = vmul.f32 %v1565, 1.442695
        %v1567 = vpow.pop %v1566
        %v1568 = vld [vmem:[%s1301] sm:$0xff]
        %v1569 = vld [vmem:[%s1301 + $0x8] sm:$0xff]
        %v1570 = vld [vmem:[%s1301 + $0x10] sm:$0xff]
        %v1571 = vld [vmem:[%s1301 + $0x18] sm:$0xff]
        %v1572 = vld [vmem:[%s1301 + $0x20] sm:$0xff]
        %v1573 = vld [vmem:[%s1301 + $0x28] sm:$0xff]
        %v1574 = vld [vmem:[%s1301 + $0x30] sm:$0xff]
        %v1575 = vld [vmem:[%s1301 + $0x38] sm:$0xff]
        %v1576 = vld [vmem:[%s1301 + $0x40] sm:$0xff]
        %v1577 = vld [vmem:[%s1301 + $0x48] sm:$0xff]
        %v1578 = vld [vmem:[%s1301 + $0x50] sm:$0xff]
        %v1579 = vld [vmem:[%s1301 + $0x58] sm:$0xff]
        %v1580 = vld [vmem:[%s1301 + $0x60] sm:$0xff]
        %v1581 = vld [vmem:[%s1301 + $0x68] sm:$0xff]
        %v1582 = vld [vmem:[%s1301 + $0x70] sm:$0xff]
        %v1583 = vld [vmem:[%s1301 + $0x78] sm:$0xff]
        %v1585 = vlaneseq
        %v1586 = vshrl.u32 %v1585, 7
        %v1587 = vsub.s32 0, %v1586
        %v1588 = vrot.slane %v1567, %v1587
        %v1589 = vlaneseq
        %v1590 = vshrl.u32 %v1589, 7
        %v1591 = vsub.s32 1, %v1590
        %v1592 = vrot.slane %v1567, %v1591
        %v1595 = vpack.c.bf16 %v1588, %v1588
        %v1596 = vpack.c.bf16 %v1592, %v1592
        %v1598 = vpack.i.b16 %v1595, %v1595
        %v1600 = vlaneseq
        %v1601 = vshrl.u32 %v1600, 7
        %v1602 = vsub.s32 0, %v1601
        %v1603 = vrot.slane %v1598, %v1602
        %v1605 = vpack.i.b16 %v1596, %v1596
        %v1607 = vlaneseq
        %v1608 = vshrl.u32 %v1607, 7
        %v1609 = vsub.s32 0, %v1608
        %v1610 = vrot.slane %v1605, %v1609
        %v1611 = vmul.bf16 %v1568, %v1603
        %v1612 = vmul.bf16 %v1569, %v1610
        %v1613 = vmul.bf16 %v1570, %v1603
        %v1614 = vmul.bf16 %v1571, %v1610
        %v1615 = vmul.bf16 %v1572, %v1603
        %v1616 = vmul.bf16 %v1573, %v1610
        %v1617 = vmul.bf16 %v1574, %v1603
        %v1618 = vmul.bf16 %v1575, %v1610
        %v1619 = vmul.bf16 %v1576, %v1603
        %v1620 = vmul.bf16 %v1577, %v1610
        %v1621 = vmul.bf16 %v1578, %v1603
        %v1622 = vmul.bf16 %v1579, %v1610
        %v1623 = vmul.bf16 %v1580, %v1603
        %v1624 = vmul.bf16 %v1581, %v1610
        %v1625 = vmul.bf16 %v1582, %v1603
        %v1626 = vmul.bf16 %v1583, %v1610
        %v1627 = vld [vmem:[#allocation2] sm:$0x3]
        %v1630 = vunpack.c.l.s4 1966171168
        %v1631 = vunpack.c.0.s8 %v1630
        %v1632 = vlaneseq
        %v1633 = vshrl.u32 %v1632, 7
        %v1634 = vsub.s32 %v1631, %v1633
        %v1635 = vrot.slane %v1627, %v1634
        %v1636 = vcombine.high %v1635, %v1635
        %v1638 = vunpack.c.l.s4 1966171168
        %v1639 = vunpack.c.0.s8 %v1638
        %v1640 = vlaneseq
        %v1641 = vshrl.u32 %v1640, 7
        %v1642 = vsub.s32 %v1639, %v1641
        %v1643 = vrot.slane %v1635, %v1642
        %v1645 = vunpack.c.l.s4 1966171168
        %v1646 = vunpack.c.0.s8 %v1645
        %v1647 = vlaneseq
        %v1648 = vshrl.u32 %v1647, 7
        %v1649 = vsub.s32 %v1646, %v1648
        %v1650 = vrot.slane %v1636, %v1649
        %1653 = vmatprep.subr.bf16.mxu0 %v1612
        %1654 = vmatpush1.bf16.xpose.msra.mxu0 %v1611
        %1655 = vmatprep.subr.bf16.mxu0 %v1614
        %1656 = vmatpush1.bf16.xpose.msra.mxu0 %v1613
        %1657 = vmatprep.subr.bf16.mxu0 %v1616
        %1658 = vmatpush1.bf16.xpose.msra.mxu0 %v1615
        %1659 = vmatprep.subr.bf16.mxu0 %v1618
        %1660 = vmatpush1.bf16.xpose.msra.mxu0 %v1617
        %1661 = vmatprep.subr.bf16.mxu0 %v1620
        %1662 = vmatpush1.bf16.xpose.msra.mxu0 %v1619
        %1663 = vmatprep.subr.bf16.mxu0 %v1622
        %1664 = vmatpush1.bf16.xpose.msra.mxu0 %v1621
        %1665 = vmatprep.subr.bf16.mxu0 %v1624
        %1666 = vmatpush1.bf16.xpose.msra.mxu0 %v1623
        %1667 = vmatprep.subr.bf16.mxu0 %v1626
        %1668 = vmatpush1.bf16.xpose.msra.mxu0 %v1625
        %1669 = vmatprep.subr.bf16.mxu0 0
        %1670 = vmatpush1.bf16.xpose.msra.mxu0 0
        %1671 = vmatprep.subr.bf16.mxu0 0
        %1672 = vmatpush1.bf16.xpose.msra.mxu0 0
        %1673 = vmatprep.subr.bf16.mxu0 0
        %1674 = vmatpush1.bf16.xpose.msra.mxu0 0
        %1675 = vmatprep.subr.bf16.mxu0 0
        %1676 = vmatpush1.bf16.xpose.msra.mxu0 0
        %1677 = vmatprep.subr.bf16.mxu0 0
        %1678 = vmatpush1.bf16.xpose.msra.mxu0 0
        %1679 = vmatprep.subr.bf16.mxu0 0
        %1680 = vmatpush1.bf16.xpose.msra.mxu0 0
        %1681 = vmatprep.subr.bf16.mxu0 0
        %1682 = vmatpush1.bf16.xpose.msra.mxu0 0
        %1683 = vmatprep.subr.bf16.mxu0 0
        %1684 = vmatpush1.bf16.xpose.msra.mxu0 0
        %1685 = vmatprep.mubr.bf16.mxu0 %v1650
        %1686 = vmatmul.mubr.bf16.gmra.mrb[0].mxu0 %v1643
        %v1687 = vpop.f32.mrb[0].mxu0
        %v1688 = vadd.f32 0.0, %v1687
        %v1689 = vpop.f32.mrb[0].mxu0
        %v1690 = vpop.f32.mrb[0].mxu0
        %v1691 = vpop.f32.mrb[0].mxu0
        %1692 = vdwg.mxu0
        %v1693 = vld [vmem:[%s3] sm:$0xf]
        %v1694 = vpack.c.bf16 %v1693, %v1693
        %v1695 = vpack.c.bf16 %v1688, %v1688
        %v1696 = vld [vmem:[%s4] sm:$0xf]
        %1698 = vset.pattern.permute.xlu0 0
        %1699 = vperm.xlu0 %1698, %v1696
        %v1700 = vpop.permute.xlu0 %1699
        %v1703 = vsel %vm449, %v1694, 0
        %v1706 = vsel %vm474, %v1695, 0
        %1708 = vmatprep.subr.bf16.mxu0 0
        %1709 = vmatpush1.bf16.msra.mxu0 %v1706
        %1710 = vmatprep.subr.bf16.mxu0 0
        %1711 = vmatpush1.bf16.msra.mxu0 0
        %1712 = vmatprep.subr.bf16.mxu0 0
        %1713 = vmatpush1.bf16.msra.mxu0 0
        %1714 = vmatprep.subr.bf16.mxu0 0
        %1715 = vmatpush1.bf16.msra.mxu0 0
        %1716 = vmatprep.subr.bf16.mxu0 0
        %1717 = vmatpush1.bf16.msra.mxu0 0
        %1718 = vmatprep.subr.bf16.mxu0 0
        %1719 = vmatpush1.bf16.msra.mxu0 0
        %1720 = vmatprep.subr.bf16.mxu0 0
        %1721 = vmatpush1.bf16.msra.mxu0 0
        %1722 = vmatprep.subr.bf16.mxu0 0
        %1723 = vmatpush1.bf16.msra.mxu0 0
        %1724 = vmatprep.subr.bf16.mxu0 0
        %1725 = vmatpush1.bf16.msra.mxu0 0
        %1726 = vmatprep.subr.bf16.mxu0 0
        %1727 = vmatpush1.bf16.msra.mxu0 0
        %1728 = vmatprep.subr.bf16.mxu0 0
        %1729 = vmatpush1.bf16.msra.mxu0 0
        %1730 = vmatprep.subr.bf16.mxu0 0
        %1731 = vmatpush1.bf16.msra.mxu0 0
        %1732 = vmatprep.subr.bf16.mxu0 0
        %1733 = vmatpush1.bf16.msra.mxu0 0
        %1734 = vmatprep.subr.bf16.mxu0 0
        %1735 = vmatpush1.bf16.msra.mxu0 0
        %1736 = vmatprep.subr.bf16.mxu0 0
        %1737 = vmatpush1.bf16.msra.mxu0 0
        %1738 = vmatprep.subr.bf16.mxu0 0
        %1739 = vmatpush1.bf16.msra.mxu0 0
        %1740 = vmatprep.mubr.bf16.mxu0 0
        %1741 = vmatmul.mubr.bf16.gmra.mrb[0].mxu0 %v1703
        %v1742 = vpop.f32.mrb[0].mxu0
        %v1743 = vadd.f32 %v1700, %v1742
        %v1744 = vpop.f32.mrb[0].mxu0
        %v1745 = vpop.f32.mrb[0].mxu0
        %v1746 = vpop.f32.mrb[0].mxu0
        %1747 = vdwg.mxu0
        %v1748 = vld [vmem:[%s312] sm:$0xf]
        %v1749 = vadd.f32 %v1743, %v1748
        %s1750 = scalar_lea.vmem %s217, 4 [#allocation9]
        %1751 = vst [vmem:[%s1750] sm:$0xf] %v1749
        %s1752 = sand.u32 %s137, 1
        %s1753 = scalar_lea.sflag [#allocation10], %s1752
        %s1754 = sand.u32 %s137, 1
        %s1755 = smul.addr %s1754, 8
        %s1756 = scalar_lea.vmem [#allocation9], %s1755
        // Predicated region
        $region41: #{tpu_custom_call.1} parent=39 // pred_check
          %p1757 = pneg %p147
        $region42: #{tpu_custom_call.1} parent=39 // pred_check_branch
          %1759 = sbr.rel (%p1757) target = $region44
        $region43: #{tpu_custom_call.1} parent=39 // pred_region
          %s1761 = ssub.s32 128, 128
          %1762 = vsyncadd %s1753, %s1761
          %s1763 = smul.addr %s19, 2
          %s1764 = smul.addr %s1763, 64
          %s1765 = scalar_lea.hbm %s5, %s1764
          %s1767 = sshll.u32 %s1756, 4
          %s1768 = int_to_ptr.vmem [resolvable:$true] %s1767
          %1770 = dma.vmem_to_hbm [thread:$0]  %s1768, 128, %s1765, %s1753
        $region44: #{tpu_custom_call.1} parent=39 // pred_fallthru
          _
      $region40: #{tpu_custom_call.1} parent=5 // pred_fallthru
        _
      %p1771 = scmp.le.s32.totalorder 2, %s14
      // Predicated region
      $region45: #{tpu_custom_call.1} parent=5 // pred_check
        %p1772 = pneg %p1771
      $region46: #{tpu_custom_call.1} parent=5 // pred_check_branch
        %1774 = sbr.rel (%p1772) target = $region48
      $region47: #{tpu_custom_call.1} parent=5 // pred_region
        %s1775 = ssub.s32 %s14, 2
        // Predicated region
        $region49: #{tpu_custom_call.1} parent=47 // pred_check
          %p1776 = pneg %p153
        $region50: #{tpu_custom_call.1} parent=47 // pred_check_branch
          %1778 = sbr.rel (%p1776) target = $region52
        $region51: #{tpu_custom_call.1} parent=47 // pred_region
          %s1779 = sand.u32 %s138, 1
          %s1780 = scalar_lea.sflag [#allocation10], %s1779
          %s1781 = sand.u32 %s138, 1
          %s1782 = smul.addr %s1781, 8
          %s1783 = scalar_lea.vmem [#allocation9], %s1782
          %1784 = dma.done %s1780, 128
        $region52: #{tpu_custom_call.1} parent=47 // pred_fallthru
          _
      $region48: #{tpu_custom_call.1} parent=5 // pred_fallthru
        _
    $region6: #{tpu_custom_call.1} parent=1 // loop_footer
      %s18 = sadd.s32 1, %s14
    $region7: #{tpu_custom_call.1} parent=1 // loop_footer_branch
      %13 = sbr.rel target = $region3
    $region8: #{tpu_custom_call.1} parent=1 // loop_exit
      _
    %1785 = vsyncpa [#allocation10], 1
    %s1786 = scalar_lea.sflag [#allocation10], 1
    %1787 = vsyncpa %s1786, 1

</llo_original>
